<compile_context>
chip_gen: v7x
topology: tpu7x:2x2x1
jax: 0.10.0
libtpu: 0.0.40
codegen_flags: <defaults>
</compile_context>

<pallas_src>
import functools

import jax
import jax.numpy as jnp
from jax.experimental import pallas as pl
from jax.experimental.pallas import tpu as pltpu

LN_EPS = 1e-5


def _layernorm(x, gamma, beta):
    mu = jnp.mean(x, axis=-1, keepdims=True)
    var = jnp.mean(jnp.square(x - mu), axis=-1, keepdims=True)
    return (x - mu) * jax.lax.rsqrt(var + LN_EPS) * gamma + beta


# ---------------------------------------------------------------------------
# Fused decoder kernel: one grid step == one (batch chunk, layer) pair.
# ---------------------------------------------------------------------------
def make_fused_kernel(num_heads):
    H = num_heads
    f32 = jnp.float32
    bf16 = jnp.bfloat16

    def kernel(tgt_ref, mem_ref, ex_ref,
               wq_ref, bq_ref, wk_ref, bk_ref, wv_ref, bv_ref, wp_ref, bp_ref,
               g2_ref, be2_ref, w1_ref, b1_ref, w2_ref, b2_ref,
               g3_ref, be3_ref,
               out_ref, attn_ref, aff_ref,
               tgt_state):
        layer = pl.program_id(1)
        Bc, Nq, C = tgt_state.shape
        Nk = mem_ref.shape[1]
        d = C // H

        # Load this chunk's queries into the carried residual stream at the
        # first layer; later layers reuse the carried value.
        @pl.when(layer == 0)
        def _():
            tgt_state[...] = tgt_ref[...]

        t = tgt_state[...]                          # (Bc, Nq, C) f32 residual
        t2d = t.reshape(Bc * Nq, C)
        mem2d = mem_ref[...].reshape(Bc * Nk, C)    # bf16
        ex = ex_ref[...]                            # (Bc, 1, C) bf16, * scale/H

        # ---- projections (bf16 in / f32 accumulate); qk scale is folded into
        # wq/bq at prepare_params() time, so no per-layer q*scale multiply. ----
        q = jnp.dot(t2d.astype(bf16), wq_ref[0], preferred_element_type=f32) + bq_ref[0]
        k = jnp.dot(mem2d, wk_ref[0], preferred_element_type=f32) + bk_ref[0]
        v = jnp.dot(mem2d, wv_ref[0], preferred_element_type=f32) + bv_ref[0]
        q3 = q.reshape(Bc, Nq, C).astype(bf16)
        k3 = k.reshape(Bc, Nk, C).astype(bf16)
        v3 = v.reshape(Bc, Nk, C).astype(bf16)

        # aff = sigmoid(mean_h(extra_h . k_h) * scale); scale/H already folded
        # into ex, so one full-C contraction gives the per-head mean exactly.
        aff = jax.nn.sigmoid(
            jnp.einsum('bxc,bkc->bxk', ex, k3,
                       preferred_element_type=f32))            # (Bc, 1, Nk)

        # ---- per-head logits (scale already in q), stacked so the softmax
        # epilogue runs ONCE over all heads instead of H tiny epilogues. ----
        s = jnp.stack(
            [jnp.einsum('bqd,bkd->bqk',
                        q3[:, :, h * d:(h + 1) * d],
                        k3[:, :, h * d:(h + 1) * d],
                        preferred_element_type=f32)
             for h in range(H)], axis=0)                        # (H, Bc, Nq, Nk)

        # attn_save.sum(heads)/H — reuse the softmax logits (no extra matmul,
        # bit-consistent with the probabilities).
        attn_sum = jnp.sum(s, axis=0) * (1.0 / H)               # (Bc, Nq, Nk)

        m = jnp.max(s, axis=-1, keepdims=True)
        e = jnp.exp(s - m)
        p = e * pl.reciprocal(jnp.sum(e, axis=-1, keepdims=True), approx=True)
        p = (p * aff[None]).astype(bf16)                        # (H, Bc, Nq, Nk)

        # ---- attend per head and accumulate the output projection directly
        # through sublane-aligned wp row slices (no lane-unaligned concat). ----
        acc = jnp.zeros((Bc * Nq, C), f32)
        for h in range(H):
            x_h = jnp.einsum('bqk,bkd->bqd', p[h],
                             v3[:, :, h * d:(h + 1) * d],
                             preferred_element_type=f32)        # (Bc, Nq, d)
            acc = acc + jnp.dot(x_h.reshape(Bc * Nq, d).astype(bf16),
                                wp_ref[0][h * d:(h + 1) * d, :],
                                preferred_element_type=f32)
        attn_out = acc + bp_ref[0]

        # ---- residual + norm2, FFN (relu), residual + norm3 (all f32) ----
        t1 = _layernorm(t2d + attn_out, g2_ref[0], be2_ref[0])
        hid = jnp.maximum(
            jnp.dot(t1.astype(bf16), w1_ref[0], preferred_element_type=f32) + b1_ref[0],
            0.0)
        ffn = jnp.dot(hid.astype(bf16), w2_ref[0], preferred_element_type=f32) + b2_ref[0]
        t_new = _layernorm(t1 + ffn, g3_ref[0], be3_ref[0])

        t_out = t_new.reshape(Bc, Nq, C)
        tgt_state[...] = t_out                                   # carry to next layer
        out_ref[...] = t_out.reshape(1, Bc, Nq, C)
        attn_ref[...] = attn_sum.reshape(1, Bc, Nq, Nk)
        aff_ref[...] = aff.reshape(1, Bc, 1, Nk)

    return kernel


# ---------------------------------------------------------------------------
# Batch-chunk selection: largest divisor of B that fits a conservative VMEM
# budget, while keeping >= 2 chunks (when B >= 2) so a v7x megacore keeps both
# TensorCores busy.
# ---------------------------------------------------------------------------
def _choose_batch_chunk(B, Nq, Nk, C, F, H):
    f4, bf = 4, 2
    per_elem = (2 * Nk * C + 6 * Nq * C + 3 * H * Nq * Nk + Nq * F) * f4 + Nk * C * bf
    budget = 16 << 20                    # conservative: fits v5e/v6e and v7x
    cap = max(1, budget // max(per_elem, 1))
    target = min(cap, max(1, B // 2)) if B >= 2 else B
    bc = 1
    for cand in range(1, B + 1):
        if B % cand == 0 and cand <= target:
            bc = cand
    return bc


@functools.partial(jax.jit, static_argnames=("num_heads", "batch_chunk"))
def _fused_decoder_call(queries, feat_bf, ex_bf, stacked, num_heads, batch_chunk):
    B, Nq, C = queries.shape
    Nk = feat_bf.shape[1]
    L = stacked[0].shape[0]
    F = stacked[10].shape[-1]            # w1: (L, C, F)
    Bc = batch_chunk
    assert B % Bc == 0
    nb = B // Bc

    wmap = lambda b, l: (l, 0, 0)        # layer-indexed weight blocks
    amap = lambda b, l: (b, 0, 0)        # batch-chunk-indexed activation blocks
    w3 = lambda x, y: pl.BlockSpec((1, x, y), wmap)
    row = lambda y: pl.BlockSpec((1, 1, y), wmap)

    in_specs = [
        pl.BlockSpec((Bc, Nq, C), amap),       # queries (f32)
        pl.BlockSpec((Bc, Nk, C), amap),       # feat (bf16)
        pl.BlockSpec((Bc, 1, C), amap),        # extra token (bf16, pre-scaled)
        w3(C, C), row(C),                      # wq (scale folded), bq
        w3(C, C), row(C),                      # wk, bk
        w3(C, C), row(C),                      # wv, bv
        w3(C, C), row(C),                      # wp, bp
        row(C), row(C),                        # g2, be2
        w3(C, F), row(F),                      # w1, b1
        w3(F, C), row(C),                      # w2, b2
        row(C), row(C),                        # g3, be3
    ]
    out_shape = (
        jax.ShapeDtypeStruct((L, B, Nq, C), jnp.float32),    # per-layer outputs
        jax.ShapeDtypeStruct((L, B, Nq, Nk), jnp.float32),   # attn_save.sum/H
        jax.ShapeDtypeStruct((L, B, 1, Nk), jnp.float32),    # aff_mask
    )
    omap = lambda b, l: (l, b, 0, 0)
    out_specs = (
        pl.BlockSpec((1, Bc, Nq, C), omap),
        pl.BlockSpec((1, Bc, Nq, Nk), omap),
        pl.BlockSpec((1, Bc, 1, Nk), omap),
    )

    # Rough per-step working set -> explicit VMEM limit with headroom
    # (double-buffered inputs/outputs/weights + live f32 intermediates).
    f4, bf = 4, 2
    w_bytes = (4 * C * C + 2 * C * F) * bf + (5 * C + F + 4 * C) * f4
    io_bytes = (Bc * Nq * C * f4 + Bc * Nk * C * bf + Bc * C * bf
                + Bc * Nq * C * f4 + Bc * Nq * Nk * f4 + Bc * Nk * f4)
    live_bytes = Bc * (2 * Nk * C + 6 * Nq * C + 3 * num_heads * Nq * Nk + Nq * F) * f4
    vmem_limit = int(min(max(2 * (w_bytes + io_bytes) + live_bytes + (8 << 20),
                             16 << 20), 60 << 20))

    grid_spec = pltpu.PrefetchScalarGridSpec(
        num_scalar_prefetch=0,
        grid=(nb, L),
        in_specs=in_specs,
        out_specs=out_specs,
        scratch_shapes=[pltpu.VMEM((Bc, Nq, C), jnp.float32)],  # carried residual
    )
    return pl.pallas_call(
        make_fused_kernel(num_heads),
        out_shape=out_shape,
        grid_spec=grid_spec,
        compiler_params=pltpu.CompilerParams(
            dimension_semantics=("parallel", "arbitrary"),
            vmem_limit_bytes=vmem_limit),
    )(queries, feat_bf, ex_bf, *stacked)


# ---------------------------------------------------------------------------
# Parameter preparation — call ONCE and cache (do not re-stack per forward).
# ---------------------------------------------------------------------------
def prepare_params(layer_params, num_heads):
    """Stack per-layer params to (L, ...): matmul weights -> bf16, biases/LN
    params -> (L, 1, X) f32, with the 1/sqrt(head_dim) qk scale folded into
    wq/bq."""
    bf16, f32 = jnp.bfloat16, jnp.float32
    C = layer_params[0]["wq"].shape[0]
    scale = float(C // num_heads) ** -0.5

    def w(name, s=1.0):
        return jnp.stack([p[name] * s for p in layer_params], 0).astype(bf16)

    def r(name, s=1.0):
        return jnp.stack([p[name] * s for p in layer_params], 0)[:, None, :].astype(f32)

    return (w("wq", scale), r("bq", scale),
            w("wk"), r("bk"),
            w("wv"), r("bv"),
            w("wp"), r("bp"),
            r("g2"), r("be2"),
            w("w1"), r("b1"),
            w("w2"), r("b2"),
            r("g3"), r("be3"))


def seg_decoder_forward(queries, feat, extra_token, stacked_params, num_heads,
                        batch_chunk=None):
    """Pallas implementation of SegDecoder.forward.

    queries: (B, Nq, C), feat: (B, Nk, C), extra_token: (B, 1, C).
    `stacked_params` must be the cached result of prepare_params().
    Returns (outputs, attns, aff_masks) — lists over layers, matching the
    PyTorch Decoder.forward return structure.
    """
    B, Nq, C = queries.shape
    Nk = feat.shape[1]
    L = stacked_params[0].shape[0]
    F = stacked_params[10].shape[-1]
    if batch_chunk is None:
        batch_chunk = _choose_batch_chunk(B, Nq, Nk, C, F, num_heads)
    # Fold the scale/H of the affinity mean into the extra token once.
    scale_over_h = float(C // num_heads) ** -0.5 / num_heads
    outs, attns, affs = _fused_decoder_call(
        queries.astype(jnp.float32),
        feat.astype(jnp.bfloat16),
        (extra_token.reshape(B, 1, C) * scale_over_h).astype(jnp.bfloat16),
        stacked_params,
        num_heads=num_heads,
        batch_chunk=batch_chunk)
    outputs = [outs[i] for i in range(L)]
    attn_list = [attns[i] for i in range(L)]
    aff_list = [affs[i].reshape(B, 1, 1, Nk) for i in range(L)]
    return outputs, attn_list, aff_list


# ---------------------------------------------------------------------------
# Pure-JAX f32 reference (mirrors the PyTorch math 1:1) for verification.
# ---------------------------------------------------------------------------
def _ref_layer(tgt, mem, ex, p, H):
    hp = jax.lax.Precision.HIGHEST
    B, Nq, C = tgt.shape
    Nk = mem.shape[1]
    d = C // H
    scale = float(d) ** -0.5
    q = jnp.einsum("bnc,cd->bnd", tgt, p["wq"], precision=hp) + p["bq"]
    k = jnp.einsum("bnc,cd->bnd", mem, p["wk"], precision=hp) + p["bk"]
    v = jnp.einsum("bnc,cd->bnd", mem, p["wv"], precision=hp) + p["bv"]
    qh = q.reshape(B, Nq, H, d).transpose(0, 2, 1, 3)
    kh = k.reshape(B, Nk, H, d).transpose(0, 2, 1, 3)
    vh = v.reshape(B, Nk, H, d).transpose(0, 2, 1, 3)
    attn = jnp.einsum("bhqd,bhkd->bhqk", qh, kh, precision=hp) * scale
    exh = ex.reshape(B, 1, H, d).transpose(0, 2, 1, 3)
    aff = jnp.einsum("bhqd,bhkd->bhqk", exh, kh, precision=hp) * scale
    aff = jax.nn.sigmoid(jnp.mean(aff, axis=1, keepdims=True))        # (B,1,1,Nk)
    attn_save = attn
    a = jax.nn.softmax(attn, axis=-1) * aff
    x = jnp.einsum("bhqk,bhkd->bhqd", a, vh,
                   precision=hp).transpose(0, 2, 1, 3).reshape(B, Nq, C)
    x = jnp.einsum("bnc,cd->bnd", x, p["wp"], precision=hp) + p["bp"]
    t = _layernorm(tgt + x, p["g2"], p["be2"])
    f = jnp.maximum(jnp.einsum("bnc,cf->bnf", t, p["w1"], precision=hp) + p["b1"], 0.0)
    f = jnp.einsum("bnf,fc->bnc", f, p["w2"], precision=hp) + p["b2"]
    t = _layernorm(t + f, p["g3"], p["be3"])
    return t, attn_save.sum(axis=1) / H, aff


def _ref_forward(queries, feat, extra_token, layer_params, num_heads):
    outs, attns, affs = [], [], []
    tgt = queries
    for p in layer_params:
        tgt, attn, aff = _ref_layer(tgt, feat, extra_token, p, num_heads)
        outs.append(tgt)
        attns.append(attn)
        affs.append(aff)
    return outs, attns, affs


# ---------------------------------------------------------------------------
# Deterministic synthetic parameter init (shapes from the module __init__).
# ---------------------------------------------------------------------------
def init_layer_params(key, dim, ffn_dim):
    ks = jax.random.split(key, 10)
    std = 0.02
    f32 = jnp.float32
    return {
        "wq": jax.random.normal(ks[0], (dim, dim), f32) * std,
        "bq": jax.random.normal(ks[1], (dim,), f32) * std,
        "wk": jax.random.normal(ks[2], (dim, dim), f32) * std,
        "bk": jax.random.normal(ks[3], (dim,), f32) * std,
        "wv": jax.random.normal(ks[4], (dim, dim), f32) * std,
        "bv": jax.random.normal(ks[5], (dim,), f32) * std,
        "wp": jax.random.normal(ks[6], (dim, dim), f32) * std,
        "bp": jax.random.normal(ks[7], (dim,), f32) * std,
        "g2": jnp.ones((dim,), f32),
        "be2": jnp.zeros((dim,), f32),
        "w1": jax.random.normal(ks[8], (dim, ffn_dim), f32) * std,
        "b1": jnp.zeros((ffn_dim,), f32),
        "w2": jax.random.normal(ks[9], (ffn_dim, dim), f32) * std,
        "b2": jnp.zeros((dim,), f32),
        "g3": jnp.ones((dim,), f32),
        "be3": jnp.zeros((dim,), f32),
    }


if __name__ == "__main__":
    # Small shapes consistent with the module: embed_dims=C, num_heads=H,
    # num_layers=L; queries (B, Nq, C), feat (B, Nk, C), extra_token (B, 1, C).
    B, Nq, Nk, C, H, L = 2, 8, 16, 32, 4, 2
    FFN = C * 4

    key = jax.random.PRNGKey(0)
    kq, kf, ke, kp = jax.random.split(key, 4)
    queries = jax.random.normal(kq, (B, Nq, C), jnp.float32)
    feat = jax.random.normal(kf, (B, Nk, C), jnp.float32)
    extra_token = jax.random.normal(ke, (B, 1, C), jnp.float32)
    layer_params = [init_layer_params(k, C, FFN) for k in jax.random.split(kp, L)]

    stacked = prepare_params(layer_params, H)   # stack/cast/scale-fold ONCE and reuse
    outs, attns, affs = seg_decoder_forward(queries, feat, extra_token, stacked, H)
    jax.block_until_ready(outs[-1])

    # Verify against the pure-JAX f32 reference (bf16 MXU inputs => loosened tol).
    r_outs, r_attns, r_affs = _ref_forward(queries, feat, extra_token, layer_params, H)
    for a, b in zip(outs, r_outs):
        assert jnp.allclose(a, b, rtol=2e-2, atol=2e-2), "output mismatch"
    for a, b in zip(attns, r_attns):
        assert jnp.allclose(a, b, rtol=2e-2, atol=2e-2), "attn mismatch"
    for a, b in zip(affs, r_affs):
        assert a.shape == (B, 1, 1, Nk)
        assert jnp.allclose(a, b, rtol=2e-2, atol=2e-2), "aff_mask mismatch"

    print("KERNEL_OK")
</pallas_src>

<mosaic_0001>
module attributes {stable_mosaic.version = 11 : i64} {
  func.func @kernel(%arg0: i32, %arg1: i32, %arg2: memref<1x8x32xf32, #tpu.memory_space<vmem>>, %arg3: memref<1x16x32xbf16, #tpu.memory_space<vmem>>, %arg4: memref<1x1x32xbf16, #tpu.memory_space<vmem>>, %arg5: memref<1x32x32xbf16, #tpu.memory_space<vmem>>, %arg6: memref<1x1x32xf32, #tpu.memory_space<vmem>>, %arg7: memref<1x32x32xbf16, #tpu.memory_space<vmem>>, %arg8: memref<1x1x32xf32, #tpu.memory_space<vmem>>, %arg9: memref<1x32x32xbf16, #tpu.memory_space<vmem>>, %arg10: memref<1x1x32xf32, #tpu.memory_space<vmem>>, %arg11: memref<1x32x32xbf16, #tpu.memory_space<vmem>>, %arg12: memref<1x1x32xf32, #tpu.memory_space<vmem>>, %arg13: memref<1x1x32xf32, #tpu.memory_space<vmem>>, %arg14: memref<1x1x32xf32, #tpu.memory_space<vmem>>, %arg15: memref<1x32x128xbf16, #tpu.memory_space<vmem>>, %arg16: memref<1x1x128xf32, #tpu.memory_space<vmem>>, %arg17: memref<1x128x32xbf16, #tpu.memory_space<vmem>>, %arg18: memref<1x1x32xf32, #tpu.memory_space<vmem>>, %arg19: memref<1x1x32xf32, #tpu.memory_space<vmem>>, %arg20: memref<1x1x32xf32, #tpu.memory_space<vmem>>, %arg21: memref<1x1x8x32xf32, #tpu.memory_space<vmem>>, %arg22: memref<1x1x8x16xf32, #tpu.memory_space<vmem>>, %arg23: memref<1x1x1x16xf32, #tpu.memory_space<vmem>>, %arg24: memref<1x8x32xf32, #tpu.memory_space<vmem>>) attributes {dimension_semantics = [#tpu.dimension_semantics<parallel>, #tpu.dimension_semantics<arbitrary>], iteration_bounds = array<i64: 2, 2>, scalar_prefetch = 0 : i64, scratch_operands = 1 : i64, tpu.core_type = #tpu.core_type<tc>, window_params = [{transform_indices = @transform_0, window_bounds = array<i64: 1, 8, 32>}, {transform_indices = @transform_1, window_bounds = array<i64: 1, 16, 32>}, {transform_indices = @transform_2, window_bounds = array<i64: 1, 1, 32>}, {transform_indices = @transform_3, window_bounds = array<i64: 1, 32, 32>}, {transform_indices = @transform_4, window_bounds = array<i64: 1, 1, 32>}, {transform_indices = @transform_5, window_bounds = array<i64: 1, 32, 32>}, {transform_indices = @transform_6, window_bounds = array<i64: 1, 1, 32>}, {transform_indices = @transform_7, window_bounds = array<i64: 1, 32, 32>}, {transform_indices = @transform_8, window_bounds = array<i64: 1, 1, 32>}, {transform_indices = @transform_9, window_bounds = array<i64: 1, 32, 32>}, {transform_indices = @transform_10, window_bounds = array<i64: 1, 1, 32>}, {transform_indices = @transform_11, window_bounds = array<i64: 1, 1, 32>}, {transform_indices = @transform_12, window_bounds = array<i64: 1, 1, 32>}, {transform_indices = @transform_13, window_bounds = array<i64: 1, 32, 128>}, {transform_indices = @transform_14, window_bounds = array<i64: 1, 1, 128>}, {transform_indices = @transform_15, window_bounds = array<i64: 1, 128, 32>}, {transform_indices = @transform_16, window_bounds = array<i64: 1, 1, 32>}, {transform_indices = @transform_17, window_bounds = array<i64: 1, 1, 32>}, {transform_indices = @transform_18, window_bounds = array<i64: 1, 1, 32>}, {transform_indices = @transform_19, window_bounds = array<i64: 1, 1, 8, 32>}, {transform_indices = @transform_20, window_bounds = array<i64: 1, 1, 8, 16>}, {transform_indices = @transform_21, window_bounds = array<i64: 1, 1, 1, 16>}]} {
    %c0_i32 = arith.constant 0 : i32
    %0 = arith.cmpi eq, %arg1, %c0_i32 : i32
    %1 = arith.extui %0 : i1 to i32
    %c0_i32_0 = arith.constant 0 : i32
    %2 = arith.cmpi ne, %1, %c0_i32_0 : i32
    scf.if %2 {
      %c0_115 = arith.constant 0 : index
      %c0_116 = arith.constant 0 : index
      %c0_117 = arith.constant 0 : index
      %205 = vector.load %arg2[%c0_115, %c0_116, %c0_117] : memref<1x8x32xf32, #tpu.memory_space<vmem>>, vector<1x8x32xf32>
      %c0_118 = arith.constant 0 : index
      %c0_119 = arith.constant 0 : index
      %c0_120 = arith.constant 0 : index
      %206 = vector.load %arg24[%c0_118, %c0_119, %c0_120] : memref<1x8x32xf32, #tpu.memory_space<vmem>>, vector<1x8x32xf32>
      tpu.vector_store %arg24[%c0_118, %c0_119, %c0_120], %205 {strides = array<i32>} : memref<1x8x32xf32, #tpu.memory_space<vmem>>, vector<1x8x32xf32>,
    } else {
    }
    %c0 = arith.constant 0 : index
    %c0_1 = arith.constant 0 : index
    %c0_2 = arith.constant 0 : index
    %3 = vector.load %arg24[%c0, %c0_1, %c0_2] : memref<1x8x32xf32, #tpu.memory_space<vmem>>, vector<1x8x32xf32>
    %4 = vector.shape_cast %3 : vector<1x8x32xf32> to vector<8x32xf32>
    %c0_3 = arith.constant 0 : index
    %c0_4 = arith.constant 0 : index
    %c0_5 = arith.constant 0 : index
    %5 = vector.load %arg3[%c0_3, %c0_4, %c0_5] : memref<1x16x32xbf16, #tpu.memory_space<vmem>>, vector<1x16x32xbf16>
    %6 = vector.shape_cast %5 : vector<1x16x32xbf16> to vector<16x32xbf16>
    %c0_6 = arith.constant 0 : index
    %c0_7 = arith.constant 0 : index
    %c0_8 = arith.constant 0 : index
    %7 = vector.load %arg4[%c0_6, %c0_7, %c0_8] : memref<1x1x32xbf16, #tpu.memory_space<vmem>>, vector<1x1x32xbf16>
    %8 = arith.truncf %4 : vector<8x32xf32> to vector<8x32xbf16>
    %c0_9 = arith.constant 0 : index
    %c0_10 = arith.constant 0 : index
    %c0_11 = arith.constant 0 : index
    %9 = vector.load %arg5[%c0_9, %c0_10, %c0_11] : memref<1x32x32xbf16, #tpu.memory_space<vmem>>, vector<1x32x32xbf16>
    %10 = vector.shape_cast %9 : vector<1x32x32xbf16> to vector<32x32xbf16>
    %cst = arith.constant dense<0.000000e+00> : vector<8x32xf32>
    %11 = tpu.matmul %8, %10, %cst {dimension_numbers = #tpu.dot_dimension_numbers<[1], [0], [0], [1], [0, 0, 1, 1], [], []>} : vector<8x32xbf16>, vector<32x32xbf16>, vector<8x32xf32> -> vector<8x32xf32>
    %c0_12 = arith.constant 0 : index
    %c0_13 = arith.constant 0 : index
    %c0_14 = arith.constant 0 : index
    %12 = vector.load %arg6[%c0_12, %c0_13, %c0_14] : memref<1x1x32xf32, #tpu.memory_space<vmem>>, vector<1x1x32xf32>
    %13 = vector.shape_cast %12 : vector<1x1x32xf32> to vector<1x32xf32>
    %14 = vector.broadcast %13 : vector<1x32xf32> to vector<8x32xf32>
    %15 = arith.addf %11, %14 : vector<8x32xf32>
    %c0_15 = arith.constant 0 : index
    %c0_16 = arith.constant 0 : index
    %c0_17 = arith.constant 0 : index
    %16 = vector.load %arg7[%c0_15, %c0_16, %c0_17] : memref<1x32x32xbf16, #tpu.memory_space<vmem>>, vector<1x32x32xbf16>
    %17 = vector.shape_cast %16 : vector<1x32x32xbf16> to vector<32x32xbf16>
    %cst_18 = arith.constant dense<0.000000e+00> : vector<16x32xf32>
    %18 = tpu.matmul %6, %17, %cst_18 {dimension_numbers = #tpu.dot_dimension_numbers<[1], [0], [0], [1], [0, 0, 1, 1], [], []>} : vector<16x32xbf16>, vector<32x32xbf16>, vector<16x32xf32> -> vector<16x32xf32>
    %c0_19 = arith.constant 0 : index
    %c0_20 = arith.constant 0 : index
    %c0_21 = arith.constant 0 : index
    %19 = vector.load %arg8[%c0_19, %c0_20, %c0_21] : memref<1x1x32xf32, #tpu.memory_space<vmem>>, vector<1x1x32xf32>
    %20 = vector.shape_cast %19 : vector<1x1x32xf32> to vector<1x32xf32>
    %21 = vector.broadcast %20 : vector<1x32xf32> to vector<16x32xf32>
    %22 = arith.addf %18, %21 : vector<16x32xf32>
    %c0_22 = arith.constant 0 : index
    %c0_23 = arith.constant 0 : index
    %c0_24 = arith.constant 0 : index
    %23 = vector.load %arg9[%c0_22, %c0_23, %c0_24] : memref<1x32x32xbf16, #tpu.memory_space<vmem>>, vector<1x32x32xbf16>
    %24 = vector.shape_cast %23 : vector<1x32x32xbf16> to vector<32x32xbf16>
    %cst_25 = arith.constant dense<0.000000e+00> : vector<16x32xf32>
    %25 = tpu.matmul %6, %24, %cst_25 {dimension_numbers = #tpu.dot_dimension_numbers<[1], [0], [0], [1], [0, 0, 1, 1], [], []>} : vector<16x32xbf16>, vector<32x32xbf16>, vector<16x32xf32> -> vector<16x32xf32>
    %c0_26 = arith.constant 0 : index
    %c0_27 = arith.constant 0 : index
    %c0_28 = arith.constant 0 : index
    %26 = vector.load %arg10[%c0_26, %c0_27, %c0_28] : memref<1x1x32xf32, #tpu.memory_space<vmem>>, vector<1x1x32xf32>
    %27 = vector.shape_cast %26 : vector<1x1x32xf32> to vector<1x32xf32>
    %28 = vector.broadcast %27 : vector<1x32xf32> to vector<16x32xf32>
    %29 = arith.addf %25, %28 : vector<16x32xf32>
    %30 = vector.shape_cast %15 : vector<8x32xf32> to vector<1x8x32xf32>
    %31 = arith.truncf %30 : vector<1x8x32xf32> to vector<1x8x32xbf16>
    %32 = vector.shape_cast %22 : vector<16x32xf32> to vector<1x16x32xf32>
    %33 = arith.truncf %32 : vector<1x16x32xf32> to vector<1x16x32xbf16>
    %34 = vector.shape_cast %29 : vector<16x32xf32> to vector<1x16x32xf32>
    %35 = arith.truncf %34 : vector<1x16x32xf32> to vector<1x16x32xbf16>
    "tpu.trace_start"() <{level = 10 : i32, message = "bxc,bkc->bxk"}> : () -> ()
    %cst_29 = arith.constant dense<0.000000e+00> : vector<1x1x16xf32>
    %36 = tpu.matmul %7, %33, %cst_29 {dimension_numbers = #tpu.dot_dimension_numbers<[2], [2], [1], [1], [0, 0, 0, 1, 1, 1], [0], [0]>} : vector<1x1x32xbf16>, vector<1x16x32xbf16>, vector<1x1x16xf32> -> vector<1x1x16xf32>
    "tpu.trace_stop"() : () -> ()
    %37 = arith.negf %36 : vector<1x1x16xf32>
    %38 = math.exp %37 : vector<1x1x16xf32>
    %cst_30 = arith.constant 1.000000e+00 : f32
    %39 = vector.broadcast %cst_30 : f32 to vector<1x1x16xf32>
    %40 = arith.addf %39, %38 : vector<1x1x16xf32>
    %41 = arith.divf %39, %40 : vector<1x1x16xf32>
    %42 = vector.extract_strided_slice %31 {offsets = [0, 0, 0], sizes = [1, 8, 8], strides = [1, 1, 1]} : vector<1x8x32xbf16> to vector<1x8x8xbf16>
    %43 = vector.extract_strided_slice %33 {offsets = [0, 0, 0], sizes = [1, 16, 8], strides = [1, 1, 1]} : vector<1x16x32xbf16> to vector<1x16x8xbf16>
    "tpu.trace_start"() <{level = 10 : i32, message = "bqd,bkd->bqk"}> : () -> ()
    %cst_31 = arith.constant dense<0.000000e+00> : vector<1x8x16xf32>
    %44 = tpu.matmul %42, %43, %cst_31 {dimension_numbers = #tpu.dot_dimension_numbers<[2], [2], [1], [1], [0, 0, 0, 1, 1, 1], [0], [0]>} : vector<1x8x8xbf16>, vector<1x16x8xbf16>, vector<1x8x16xf32> -> vector<1x8x16xf32>
    "tpu.trace_stop"() : () -> ()
    %45 = vector.extract_strided_slice %31 {offsets = [0, 0, 8], sizes = [1, 8, 8], strides = [1, 1, 1]} : vector<1x8x32xbf16> to vector<1x8x8xbf16>
    %46 = vector.extract_strided_slice %33 {offsets = [0, 0, 8], sizes = [1, 16, 8], strides = [1, 1, 1]} : vector<1x16x32xbf16> to vector<1x16x8xbf16>
    "tpu.trace_start"() <{level = 10 : i32, message = "bqd,bkd->bqk"}> : () -> ()
    %cst_32 = arith.constant dense<0.000000e+00> : vector<1x8x16xf32>
    %47 = tpu.matmul %45, %46, %cst_32 {dimension_numbers = #tpu.dot_dimension_numbers<[2], [2], [1], [1], [0, 0, 0, 1, 1, 1], [0], [0]>} : vector<1x8x8xbf16>, vector<1x16x8xbf16>, vector<1x8x16xf32> -> vector<1x8x16xf32>
    "tpu.trace_stop"() : () -> ()
    %48 = vector.extract_strided_slice %31 {offsets = [0, 0, 16], sizes = [1, 8, 8], strides = [1, 1, 1]} : vector<1x8x32xbf16> to vector<1x8x8xbf16>
    %49 = vector.extract_strided_slice %33 {offsets = [0, 0, 16], sizes = [1, 16, 8], strides = [1, 1, 1]} : vector<1x16x32xbf16> to vector<1x16x8xbf16>
    "tpu.trace_start"() <{level = 10 : i32, message = "bqd,bkd->bqk"}> : () -> ()
    %cst_33 = arith.constant dense<0.000000e+00> : vector<1x8x16xf32>
    %50 = tpu.matmul %48, %49, %cst_33 {dimension_numbers = #tpu.dot_dimension_numbers<[2], [2], [1], [1], [0, 0, 0, 1, 1, 1], [0], [0]>} : vector<1x8x8xbf16>, vector<1x16x8xbf16>, vector<1x8x16xf32> -> vector<1x8x16xf32>
    "tpu.trace_stop"() : () -> ()
    %51 = vector.extract_strided_slice %31 {offsets = [0, 0, 24], sizes = [1, 8, 8], strides = [1, 1, 1]} : vector<1x8x32xbf16> to vector<1x8x8xbf16>
    %52 = vector.extract_strided_slice %33 {offsets = [0, 0, 24], sizes = [1, 16, 8], strides = [1, 1, 1]} : vector<1x16x32xbf16> to vector<1x16x8xbf16>
    "tpu.trace_start"() <{level = 10 : i32, message = "bqd,bkd->bqk"}> : () -> ()
    %cst_34 = arith.constant dense<0.000000e+00> : vector<1x8x16xf32>
    %53 = tpu.matmul %51, %52, %cst_34 {dimension_numbers = #tpu.dot_dimension_numbers<[2], [2], [1], [1], [0, 0, 0, 1, 1, 1], [0], [0]>} : vector<1x8x8xbf16>, vector<1x16x8xbf16>, vector<1x8x16xf32> -> vector<1x8x16xf32>
    "tpu.trace_stop"() : () -> ()
    %54 = vector.shape_cast %44 : vector<1x8x16xf32> to vector<1x1x8x16xf32>
    %55 = vector.shape_cast %47 : vector<1x8x16xf32> to vector<1x1x8x16xf32>
    %56 = vector.shape_cast %50 : vector<1x8x16xf32> to vector<1x1x8x16xf32>
    %57 = vector.shape_cast %53 : vector<1x8x16xf32> to vector<1x1x8x16xf32>
    %58 = tpu.concatenate %54, %55, %56, %57 in 0 : vector<1x1x8x16xf32>, vector<1x1x8x16xf32>, vector<1x1x8x16xf32>, vector<1x1x8x16xf32> -> vector<4x1x8x16xf32>
    %cst_35 = arith.constant dense<0.000000e+00> : vector<1x8x16xf32>
    %59 = vector.multi_reduction <add>, %58, %cst_35 [0] : vector<4x1x8x16xf32> to vector<1x8x16xf32>
    %cst_36 = arith.constant 2.500000e-01 : f32
    %60 = vector.broadcast %cst_36 : f32 to vector<1x8x16xf32>
    %61 = arith.mulf %59, %60 : vector<1x8x16xf32>
    %cst_37 = arith.constant dense<0xFF800000> : vector<4x1x8xf32>
    %62 = vector.multi_reduction <maximumf>, %58, %cst_37 [3] : vector<4x1x8x16xf32> to vector<4x1x8xf32>
    %63 = vector.shape_cast %62 : vector<4x1x8xf32> to vector<4x1x8x1xf32>
    %64 = vector.broadcast %63 : vector<4x1x8x1xf32> to vector<4x1x8x16xf32>
    %65 = arith.subf %58, %64 : vector<4x1x8x16xf32>
    %66 = math.exp %65 : vector<4x1x8x16xf32>
    %cst_38 = arith.constant dense<0.000000e+00> : vector<4x1x8xf32>
    %67 = vector.multi_reduction <add>, %66, %cst_38 [3] : vector<4x1x8x16xf32> to vector<4x1x8xf32>
    %68 = vector.shape_cast %67 : vector<4x1x8xf32> to vector<4x1x8x1xf32>
    %69 = tpu.reciprocal %68 {approx = true} : vector<4x1x8x1xf32> -> vector<4x1x8x1xf32>
    %70 = vector.broadcast %69 : vector<4x1x8x1xf32> to vector<4x1x8x16xf32>
    %71 = arith.mulf %66, %70 : vector<4x1x8x16xf32>
    %72 = vector.shape_cast %41 : vector<1x1x16xf32> to vector<1x1x1x16xf32>
    %73 = vector.broadcast %72 : vector<1x1x1x16xf32> to vector<4x1x8x16xf32>
    %74 = arith.mulf %71, %73 : vector<4x1x8x16xf32>
    %75 = arith.truncf %74 : vector<4x1x8x16xf32> to vector<4x1x8x16xbf16>
    %cst_39 = arith.constant 0.000000e+00 : f32
    %76 = vector.broadcast %cst_39 : f32 to vector<8x32xf32>
    %77 = vector.extract_strided_slice %75 {offsets = [0, 0, 0, 0], sizes = [1, 1, 8, 16], strides = [1, 1, 1, 1]} : vector<4x1x8x16xbf16> to vector<1x1x8x16xbf16>
    %78 = vector.shape_cast %77 : vector<1x1x8x16xbf16> to vector<1x8x16xbf16>
    %79 = vector.extract_strided_slice %35 {offsets = [0, 0, 0], sizes = [1, 16, 8], strides = [1, 1, 1]} : vector<1x16x32xbf16> to vector<1x16x8xbf16>
    "tpu.trace_start"() <{level = 10 : i32, message = "bqk,bkd->bqd"}> : () -> ()
    %cst_40 = arith.constant dense<0.000000e+00> : vector<1x8x8xf32>
    %80 = tpu.matmul %78, %79, %cst_40 {dimension_numbers = #tpu.dot_dimension_numbers<[2], [1], [1], [2], [0, 0, 0, 1, 1, 2], [0], [0]>} : vector<1x8x16xbf16>, vector<1x16x8xbf16>, vector<1x8x8xf32> -> vector<1x8x8xf32>
    "tpu.trace_stop"() : () -> ()
    %81 = vector.shape_cast %80 : vector<1x8x8xf32> to vector<8x8xf32>
    %82 = arith.truncf %81 : vector<8x8xf32> to vector<8x8xbf16>
    %c0_41 = arith.constant 0 : index
    %c0_42 = arith.constant 0 : index
    %c0_43 = arith.constant 0 : index
    %83 = vector.load %arg11[%c0_41, %c0_42, %c0_43] : memref<1x32x32xbf16, #tpu.memory_space<vmem>>, vector<1x32x32xbf16>
    %84 = vector.shape_cast %83 : vector<1x32x32xbf16> to vector<32x32xbf16>
    %85 = vector.extract_strided_slice %84 {offsets = [0, 0], sizes = [8, 32], strides = [1, 1]} : vector<32x32xbf16> to vector<8x32xbf16>
    %cst_44 = arith.constant dense<0.000000e+00> : vector<8x32xf32>
    %86 = tpu.matmul %82, %85, %cst_44 {dimension_numbers = #tpu.dot_dimension_numbers<[1], [0], [0], [1], [0, 0, 1, 1], [], []>} : vector<8x8xbf16>, vector<8x32xbf16>, vector<8x32xf32> -> vector<8x32xf32>
    %87 = arith.addf %76, %86 : vector<8x32xf32>
    %88 = vector.extract_strided_slice %75 {offsets = [1, 0, 0, 0], sizes = [1, 1, 8, 16], strides = [1, 1, 1, 1]} : vector<4x1x8x16xbf16> to vector<1x1x8x16xbf16>
    %89 = vector.shape_cast %88 : vector<1x1x8x16xbf16> to vector<1x8x16xbf16>
    %90 = vector.extract_strided_slice %35 {offsets = [0, 0, 8], sizes = [1, 16, 8], strides = [1, 1, 1]} : vector<1x16x32xbf16> to vector<1x16x8xbf16>
    "tpu.trace_start"() <{level = 10 : i32, message = "bqk,bkd->bqd"}> : () -> ()
    %cst_45 = arith.constant dense<0.000000e+00> : vector<1x8x8xf32>
    %91 = tpu.matmul %89, %90, %cst_45 {dimension_numbers = #tpu.dot_dimension_numbers<[2], [1], [1], [2], [0, 0, 0, 1, 1, 2], [0], [0]>} : vector<1x8x16xbf16>, vector<1x16x8xbf16>, vector<1x8x8xf32> -> vector<1x8x8xf32>
    "tpu.trace_stop"() : () -> ()
    %92 = vector.shape_cast %91 : vector<1x8x8xf32> to vector<8x8xf32>
    %93 = arith.truncf %92 : vector<8x8xf32> to vector<8x8xbf16>
    %c0_46 = arith.constant 0 : index
    %c0_47 = arith.constant 0 : index
    %c0_48 = arith.constant 0 : index
    %94 = vector.load %arg11[%c0_46, %c0_47, %c0_48] : memref<1x32x32xbf16, #tpu.memory_space<vmem>>, vector<1x32x32xbf16>
    %95 = vector.shape_cast %94 : vector<1x32x32xbf16> to vector<32x32xbf16>
    %96 = vector.extract_strided_slice %95 {offsets = [8, 0], sizes = [8, 32], strides = [1, 1]} : vector<32x32xbf16> to vector<8x32xbf16>
    %cst_49 = arith.constant dense<0.000000e+00> : vector<8x32xf32>
    %97 = tpu.matmul %93, %96, %cst_49 {dimension_numbers = #tpu.dot_dimension_numbers<[1], [0], [0], [1], [0, 0, 1, 1], [], []>} : vector<8x8xbf16>, vector<8x32xbf16>, vector<8x32xf32> -> vector<8x32xf32>
    %98 = arith.addf %87, %97 : vector<8x32xf32>
    %99 = vector.extract_strided_slice %75 {offsets = [2, 0, 0, 0], sizes = [1, 1, 8, 16], strides = [1, 1, 1, 1]} : vector<4x1x8x16xbf16> to vector<1x1x8x16xbf16>
    %100 = vector.shape_cast %99 : vector<1x1x8x16xbf16> to vector<1x8x16xbf16>
    %101 = vector.extract_strided_slice %35 {offsets = [0, 0, 16], sizes = [1, 16, 8], strides = [1, 1, 1]} : vector<1x16x32xbf16> to vector<1x16x8xbf16>
    "tpu.trace_start"() <{level = 10 : i32, message = "bqk,bkd->bqd"}> : () -> ()
    %cst_50 = arith.constant dense<0.000000e+00> : vector<1x8x8xf32>
    %102 = tpu.matmul %100, %101, %cst_50 {dimension_numbers = #tpu.dot_dimension_numbers<[2], [1], [1], [2], [0, 0, 0, 1, 1, 2], [0], [0]>} : vector<1x8x16xbf16>, vector<1x16x8xbf16>, vector<1x8x8xf32> -> vector<1x8x8xf32>
    "tpu.trace_stop"() : () -> ()
    %103 = vector.shape_cast %102 : vector<1x8x8xf32> to vector<8x8xf32>
    %104 = arith.truncf %103 : vector<8x8xf32> to vector<8x8xbf16>
    %c0_51 = arith.constant 0 : index
    %c0_52 = arith.constant 0 : index
    %c0_53 = arith.constant 0 : index
    %105 = vector.load %arg11[%c0_51, %c0_52, %c0_53] : memref<1x32x32xbf16, #tpu.memory_space<vmem>>, vector<1x32x32xbf16>
    %106 = vector.shape_cast %105 : vector<1x32x32xbf16> to vector<32x32xbf16>
    %107 = vector.extract_strided_slice %106 {offsets = [16, 0], sizes = [8, 32], strides = [1, 1]} : vector<32x32xbf16> to vector<8x32xbf16>
    %cst_54 = arith.constant dense<0.000000e+00> : vector<8x32xf32>
    %108 = tpu.matmul %104, %107, %cst_54 {dimension_numbers = #tpu.dot_dimension_numbers<[1], [0], [0], [1], [0, 0, 1, 1], [], []>} : vector<8x8xbf16>, vector<8x32xbf16>, vector<8x32xf32> -> vector<8x32xf32>
    %109 = arith.addf %98, %108 : vector<8x32xf32>
    %110 = vector.extract_strided_slice %75 {offsets = [3, 0, 0, 0], sizes = [1, 1, 8, 16], strides = [1, 1, 1, 1]} : vector<4x1x8x16xbf16> to vector<1x1x8x16xbf16>
    %111 = vector.shape_cast %110 : vector<1x1x8x16xbf16> to vector<1x8x16xbf16>
    %112 = vector.extract_strided_slice %35 {offsets = [0, 0, 24], sizes = [1, 16, 8], strides = [1, 1, 1]} : vector<1x16x32xbf16> to vector<1x16x8xbf16>
    "tpu.trace_start"() <{level = 10 : i32, message = "bqk,bkd->bqd"}> : () -> ()
    %cst_55 = arith.constant dense<0.000000e+00> : vector<1x8x8xf32>
    %113 = tpu.matmul %111, %112, %cst_55 {dimension_numbers = #tpu.dot_dimension_numbers<[2], [1], [1], [2], [0, 0, 0, 1, 1, 2], [0], [0]>} : vector<1x8x16xbf16>, vector<1x16x8xbf16>, vector<1x8x8xf32> -> vector<1x8x8xf32>
    "tpu.trace_stop"() : () -> ()
    %114 = vector.shape_cast %113 : vector<1x8x8xf32> to vector<8x8xf32>
    %115 = arith.truncf %114 : vector<8x8xf32> to vector<8x8xbf16>
    %c0_56 = arith.constant 0 : index
    %c0_57 = arith.constant 0 : index
    %c0_58 = arith.constant 0 : index
    %116 = vector.load %arg11[%c0_56, %c0_57, %c0_58] : memref<1x32x32xbf16, #tpu.memory_space<vmem>>, vector<1x32x32xbf16>
    %117 = vector.shape_cast %116 : vector<1x32x32xbf16> to vector<32x32xbf16>
    %118 = vector.extract_strided_slice %117 {offsets = [24, 0], sizes = [8, 32], strides = [1, 1]} : vector<32x32xbf16> to vector<8x32xbf16>
    %cst_59 = arith.constant dense<0.000000e+00> : vector<8x32xf32>
    %119 = tpu.matmul %115, %118, %cst_59 {dimension_numbers = #tpu.dot_dimension_numbers<[1], [0], [0], [1], [0, 0, 1, 1], [], []>} : vector<8x8xbf16>, vector<8x32xbf16>, vector<8x32xf32> -> vector<8x32xf32>
    %120 = arith.addf %109, %119 : vector<8x32xf32>
    %c0_60 = arith.constant 0 : index
    %c0_61 = arith.constant 0 : index
    %c0_62 = arith.constant 0 : index
    %121 = vector.load %arg12[%c0_60, %c0_61, %c0_62] : memref<1x1x32xf32, #tpu.memory_space<vmem>>, vector<1x1x32xf32>
    %122 = vector.shape_cast %121 : vector<1x1x32xf32> to vector<1x32xf32>
    %123 = vector.broadcast %122 : vector<1x32xf32> to vector<8x32xf32>
    %124 = arith.addf %120, %123 : vector<8x32xf32>
    %125 = arith.addf %4, %124 : vector<8x32xf32>
    %c0_63 = arith.constant 0 : index
    %c0_64 = arith.constant 0 : index
    %c0_65 = arith.constant 0 : index
    %126 = vector.load %arg13[%c0_63, %c0_64, %c0_65] : memref<1x1x32xf32, #tpu.memory_space<vmem>>, vector<1x1x32xf32>
    %127 = vector.shape_cast %126 : vector<1x1x32xf32> to vector<1x32xf32>
    %c0_66 = arith.constant 0 : index
    %c0_67 = arith.constant 0 : index
    %c0_68 = arith.constant 0 : index
    %128 = vector.load %arg14[%c0_66, %c0_67, %c0_68] : memref<1x1x32xf32, #tpu.memory_space<vmem>>, vector<1x1x32xf32>
    %129 = vector.shape_cast %128 : vector<1x1x32xf32> to vector<1x32xf32>
    %cst_69 = arith.constant dense<0.000000e+00> : vector<8xf32>
    %130 = vector.multi_reduction <add>, %125, %cst_69 [1] : vector<8x32xf32> to vector<8xf32>
    %131 = vector.shape_cast %130 : vector<8xf32> to vector<8x1xf32>
    %cst_70 = arith.constant 3.200000e+01 : f32
    %132 = vector.broadcast %cst_70 : f32 to vector<8x1xf32>
    %133 = arith.divf %131, %132 : vector<8x1xf32>
    %134 = vector.broadcast %133 : vector<8x1xf32> to vector<8x32xf32>
    %135 = arith.subf %125, %134 : vector<8x32xf32>
    %136 = arith.mulf %135, %135 : vector<8x32xf32>
    %cst_71 = arith.constant dense<0.000000e+00> : vector<8xf32>
    %137 = vector.multi_reduction <add>, %136, %cst_71 [1] : vector<8x32xf32> to vector<8xf32>
    %138 = vector.shape_cast %137 : vector<8xf32> to vector<8x1xf32>
    %cst_72 = arith.constant 3.200000e+01 : f32
    %139 = vector.broadcast %cst_72 : f32 to vector<8x1xf32>
    %140 = arith.divf %138, %139 : vector<8x1xf32>
    %141 = vector.broadcast %133 : vector<8x1xf32> to vector<8x32xf32>
    %142 = arith.subf %125, %141 : vector<8x32xf32>
    %cst_73 = arith.constant 9.99999974E-6 : f32
    %143 = vector.broadcast %cst_73 : f32 to vector<8x1xf32>
    %144 = arith.addf %140, %143 : vector<8x1xf32>
    %145 = math.rsqrt %144 : vector<8x1xf32>
    %146 = vector.broadcast %145 : vector<8x1xf32> to vector<8x32xf32>
    %147 = arith.mulf %142, %146 : vector<8x32xf32>
    %148 = vector.broadcast %127 : vector<1x32xf32> to vector<8x32xf32>
    %149 = arith.mulf %147, %148 : vector<8x32xf32>
    %150 = vector.broadcast %129 : vector<1x32xf32> to vector<8x32xf32>
    %151 = arith.addf %149, %150 : vector<8x32xf32>
    %152 = arith.truncf %151 : vector<8x32xf32> to vector<8x32xbf16>
    %c0_74 = arith.constant 0 : index
    %c0_75 = arith.constant 0 : index
    %c0_76 = arith.constant 0 : index
    %153 = vector.load %arg15[%c0_74, %c0_75, %c0_76] : memref<1x32x128xbf16, #tpu.memory_space<vmem>>, vector<1x32x128xbf16>
    %154 = vector.shape_cast %153 : vector<1x32x128xbf16> to vector<32x128xbf16>
    %cst_77 = arith.constant dense<0.000000e+00> : vector<8x128xf32>
    %155 = tpu.matmul %152, %154, %cst_77 {dimension_numbers = #tpu.dot_dimension_numbers<[1], [0], [0], [1], [0, 0, 1, 1], [], []>} : vector<8x32xbf16>, vector<32x128xbf16>, vector<8x128xf32> -> vector<8x128xf32>
    %c0_78 = arith.constant 0 : index
    %c0_79 = arith.constant 0 : index
    %c0_80 = arith.constant 0 : index
    %156 = vector.load %arg16[%c0_78, %c0_79, %c0_80] : memref<1x1x128xf32, #tpu.memory_space<vmem>>, vector<1x1x128xf32>
    %157 = vector.shape_cast %156 : vector<1x1x128xf32> to vector<1x128xf32>
    %158 = vector.broadcast %157 : vector<1x128xf32> to vector<8x128xf32>
    %159 = arith.addf %155, %158 : vector<8x128xf32>
    %cst_81 = arith.constant 0.000000e+00 : f32
    %160 = vector.broadcast %cst_81 : f32 to vector<8x128xf32>
    %161 = arith.maximumf %159, %160 : vector<8x128xf32>
    %162 = arith.truncf %161 : vector<8x128xf32> to vector<8x128xbf16>
    %c0_82 = arith.constant 0 : index
    %c0_83 = arith.constant 0 : index
    %c0_84 = arith.constant 0 : index
    %163 = vector.load %arg17[%c0_82, %c0_83, %c0_84] : memref<1x128x32xbf16, #tpu.memory_space<vmem>>, vector<1x128x32xbf16>
    %164 = vector.shape_cast %163 : vector<1x128x32xbf16> to vector<128x32xbf16>
    %cst_85 = arith.constant dense<0.000000e+00> : vector<8x32xf32>
    %165 = tpu.matmul %162, %164, %cst_85 {dimension_numbers = #tpu.dot_dimension_numbers<[1], [0], [0], [1], [0, 0, 1, 1], [], []>} : vector<8x128xbf16>, vector<128x32xbf16>, vector<8x32xf32> -> vector<8x32xf32>
    %c0_86 = arith.constant 0 : index
    %c0_87 = arith.constant 0 : index
    %c0_88 = arith.constant 0 : index
    %166 = vector.load %arg18[%c0_86, %c0_87, %c0_88] : memref<1x1x32xf32, #tpu.memory_space<vmem>>, vector<1x1x32xf32>
    %167 = vector.shape_cast %166 : vector<1x1x32xf32> to vector<1x32xf32>
    %168 = vector.broadcast %167 : vector<1x32xf32> to vector<8x32xf32>
    %169 = arith.addf %165, %168 : vector<8x32xf32>
    %170 = arith.addf %151, %169 : vector<8x32xf32>
    %c0_89 = arith.constant 0 : index
    %c0_90 = arith.constant 0 : index
    %c0_91 = arith.constant 0 : index
    %171 = vector.load %arg19[%c0_89, %c0_90, %c0_91] : memref<1x1x32xf32, #tpu.memory_space<vmem>>, vector<1x1x32xf32>
    %172 = vector.shape_cast %171 : vector<1x1x32xf32> to vector<1x32xf32>
    %c0_92 = arith.constant 0 : index
    %c0_93 = arith.constant 0 : index
    %c0_94 = arith.constant 0 : index
    %173 = vector.load %arg20[%c0_92, %c0_93, %c0_94] : memref<1x1x32xf32, #tpu.memory_space<vmem>>, vector<1x1x32xf32>
    %174 = vector.shape_cast %173 : vector<1x1x32xf32> to vector<1x32xf32>
    %cst_95 = arith.constant dense<0.000000e+00> : vector<8xf32>
    %175 = vector.multi_reduction <add>, %170, %cst_95 [1] : vector<8x32xf32> to vector<8xf32>
    %176 = vector.shape_cast %175 : vector<8xf32> to vector<8x1xf32>
    %cst_96 = arith.constant 3.200000e+01 : f32
    %177 = vector.broadcast %cst_96 : f32 to vector<8x1xf32>
    %178 = arith.divf %176, %177 : vector<8x1xf32>
    %179 = vector.broadcast %178 : vector<8x1xf32> to vector<8x32xf32>
    %180 = arith.subf %170, %179 : vector<8x32xf32>
    %181 = arith.mulf %180, %180 : vector<8x32xf32>
    %cst_97 = arith.constant dense<0.000000e+00> : vector<8xf32>
    %182 = vector.multi_reduction <add>, %181, %cst_97 [1] : vector<8x32xf32> to vector<8xf32>
    %183 = vector.shape_cast %182 : vector<8xf32> to vector<8x1xf32>
    %cst_98 = arith.constant 3.200000e+01 : f32
    %184 = vector.broadcast %cst_98 : f32 to vector<8x1xf32>
    %185 = arith.divf %183, %184 : vector<8x1xf32>
    %186 = vector.broadcast %178 : vector<8x1xf32> to vector<8x32xf32>
    %187 = arith.subf %170, %186 : vector<8x32xf32>
    %cst_99 = arith.constant 9.99999974E-6 : f32
    %188 = vector.broadcast %cst_99 : f32 to vector<8x1xf32>
    %189 = arith.addf %185, %188 : vector<8x1xf32>
    %190 = math.rsqrt %189 : vector<8x1xf32>
    %191 = vector.broadcast %190 : vector<8x1xf32> to vector<8x32xf32>
    %192 = arith.mulf %187, %191 : vector<8x32xf32>
    %193 = vector.broadcast %172 : vector<1x32xf32> to vector<8x32xf32>
    %194 = arith.mulf %192, %193 : vector<8x32xf32>
    %195 = vector.broadcast %174 : vector<1x32xf32> to vector<8x32xf32>
    %196 = arith.addf %194, %195 : vector<8x32xf32>
    %197 = vector.shape_cast %196 : vector<8x32xf32> to vector<1x8x32xf32>
    %c0_100 = arith.constant 0 : index
    %c0_101 = arith.constant 0 : index
    %c0_102 = arith.constant 0 : index
    %198 = vector.load %arg24[%c0_100, %c0_101, %c0_102] : memref<1x8x32xf32, #tpu.memory_space<vmem>>, vector<1x8x32xf32>
    tpu.vector_store %arg24[%c0_100, %c0_101, %c0_102], %197 {strides = array<i32>} : memref<1x8x32xf32, #tpu.memory_space<vmem>>, vector<1x8x32xf32>,
    %199 = vector.shape_cast %197 : vector<1x8x32xf32> to vector<1x1x8x32xf32>
    %c0_103 = arith.constant 0 : index
    %c0_104 = arith.constant 0 : index
    %c0_105 = arith.constant 0 : index
    %c0_106 = arith.constant 0 : index
    %200 = vector.load %arg21[%c0_103, %c0_104, %c0_105, %c0_106] : memref<1x1x8x32xf32, #tpu.memory_space<vmem>>, vector<1x1x8x32xf32>
    tpu.vector_store %arg21[%c0_103, %c0_104, %c0_105, %c0_106], %199 {strides = array<i32>} : memref<1x1x8x32xf32, #tpu.memory_space<vmem>>, vector<1x1x8x32xf32>,
    %201 = vector.shape_cast %61 : vector<1x8x16xf32> to vector<1x1x8x16xf32>
    %c0_107 = arith.constant 0 : index
    %c0_108 = arith.constant 0 : index
    %c0_109 = arith.constant 0 : index
    %c0_110 = arith.constant 0 : index
    %202 = vector.load %arg22[%c0_107, %c0_108, %c0_109, %c0_110] : memref<1x1x8x16xf32, #tpu.memory_space<vmem>>, vector<1x1x8x16xf32>
    tpu.vector_store %arg22[%c0_107, %c0_108, %c0_109, %c0_110], %201 {strides = array<i32>} : memref<1x1x8x16xf32, #tpu.memory_space<vmem>>, vector<1x1x8x16xf32>,
    %203 = vector.shape_cast %41 : vector<1x1x16xf32> to vector<1x1x1x16xf32>
    %c0_111 = arith.constant 0 : index
    %c0_112 = arith.constant 0 : index
    %c0_113 = arith.constant 0 : index
    %c0_114 = arith.constant 0 : index
    %204 = vector.load %arg23[%c0_111, %c0_112, %c0_113, %c0_114] : memref<1x1x1x16xf32, #tpu.memory_space<vmem>>, vector<1x1x1x16xf32>
    tpu.vector_store %arg23[%c0_111, %c0_112, %c0_113, %c0_114], %203 {strides = array<i32>} : memref<1x1x1x16xf32, #tpu.memory_space<vmem>>, vector<1x1x1x16xf32>,
    return
  }
  func.func @transform_0(%arg0: i32, %arg1: i32) -> (i32, i32, i32) {
    %c0_i32 = arith.constant 0 : i32
    %c0_i32_0 = arith.constant 0 : i32
    %c0_i32_1 = arith.constant 0 : i32
    return %arg0, %c0_i32, %c0_i32_0 : i32, i32, i32
  }
  func.func @transform_1(%arg0: i32, %arg1: i32) -> (i32, i32, i32) {
    %c0_i32 = arith.constant 0 : i32
    %c0_i32_0 = arith.constant 0 : i32
    %c0_i32_1 = arith.constant 0 : i32
    return %arg0, %c0_i32, %c0_i32_0 : i32, i32, i32
  }
  func.func @transform_2(%arg0: i32, %arg1: i32) -> (i32, i32, i32) {
    %c0_i32 = arith.constant 0 : i32
    %c0_i32_0 = arith.constant 0 : i32
    %c0_i32_1 = arith.constant 0 : i32
    return %arg0, %c0_i32, %c0_i32_0 : i32, i32, i32
  }
  func.func @transform_3(%arg0: i32, %arg1: i32) -> (i32, i32, i32) {
    %c0_i32 = arith.constant 0 : i32
    %c0_i32_0 = arith.constant 0 : i32
    %c0_i32_1 = arith.constant 0 : i32
    return %arg1, %c0_i32, %c0_i32_0 : i32, i32, i32
  }
  func.func @transform_4(%arg0: i32, %arg1: i32) -> (i32, i32, i32) {
    %c0_i32 = arith.constant 0 : i32
    %c0_i32_0 = arith.constant 0 : i32
    %c0_i32_1 = arith.constant 0 : i32
    return %arg1, %c0_i32, %c0_i32_0 : i32, i32, i32
  }
  func.func @transform_5(%arg0: i32, %arg1: i32) -> (i32, i32, i32) {
    %c0_i32 = arith.constant 0 : i32
    %c0_i32_0 = arith.constant 0 : i32
    %c0_i32_1 = arith.constant 0 : i32
    return %arg1, %c0_i32, %c0_i32_0 : i32, i32, i32
  }
  func.func @transform_6(%arg0: i32, %arg1: i32) -> (i32, i32, i32) {
    %c0_i32 = arith.constant 0 : i32
    %c0_i32_0 = arith.constant 0 : i32
    %c0_i32_1 = arith.constant 0 : i32
    return %arg1, %c0_i32, %c0_i32_0 : i32, i32, i32
  }
  func.func @transform_7(%arg0: i32, %arg1: i32) -> (i32, i32, i32) {
    %c0_i32 = arith.constant 0 : i32
    %c0_i32_0 = arith.constant 0 : i32
    %c0_i32_1 = arith.constant 0 : i32
    return %arg1, %c0_i32, %c0_i32_0 : i32, i32, i32
  }
  func.func @transform_8(%arg0: i32, %arg1: i32) -> (i32, i32, i32) {
    %c0_i32 = arith.constant 0 : i32
    %c0_i32_0 = arith.constant 0 : i32
    %c0_i32_1 = arith.constant 0 : i32
    return %arg1, %c0_i32, %c0_i32_0 : i32, i32, i32
  }
  func.func @transform_9(%arg0: i32, %arg1: i32) -> (i32, i32, i32) {
    %c0_i32 = arith.constant 0 : i32
    %c0_i32_0 = arith.constant 0 : i32
    %c0_i32_1 = arith.constant 0 : i32
    return %arg1, %c0_i32, %c0_i32_0 : i32, i32, i32
  }
  func.func @transform_10(%arg0: i32, %arg1: i32) -> (i32, i32, i32) {
    %c0_i32 = arith.constant 0 : i32
    %c0_i32_0 = arith.constant 0 : i32
    %c0_i32_1 = arith.constant 0 : i32
    return %arg1, %c0_i32, %c0_i32_0 : i32, i32, i32
  }
  func.func @transform_11(%arg0: i32, %arg1: i32) -> (i32, i32, i32) {
    %c0_i32 = arith.constant 0 : i32
    %c0_i32_0 = arith.constant 0 : i32
    %c0_i32_1 = arith.constant 0 : i32
    return %arg1, %c0_i32, %c0_i32_0 : i32, i32, i32
  }
  func.func @transform_12(%arg0: i32, %arg1: i32) -> (i32, i32, i32) {
    %c0_i32 = arith.constant 0 : i32
    %c0_i32_0 = arith.constant 0 : i32
    %c0_i32_1 = arith.constant 0 : i32
    return %arg1, %c0_i32, %c0_i32_0 : i32, i32, i32
  }
  func.func @transform_13(%arg0: i32, %arg1: i32) -> (i32, i32, i32) {
    %c0_i32 = arith.constant 0 : i32
    %c0_i32_0 = arith.constant 0 : i32
    %c0_i32_1 = arith.constant 0 : i32
    return %arg1, %c0_i32, %c0_i32_0 : i32, i32, i32
  }
  func.func @transform_14(%arg0: i32, %arg1: i32) -> (i32, i32, i32) {
    %c0_i32 = arith.constant 0 : i32
    %c0_i32_0 = arith.constant 0 : i32
    %c0_i32_1 = arith.constant 0 : i32
    return %arg1, %c0_i32, %c0_i32_0 : i32, i32, i32
  }
  func.func @transform_15(%arg0: i32, %arg1: i32) -> (i32, i32, i32) {
    %c0_i32 = arith.constant 0 : i32
    %c0_i32_0 = arith.constant 0 : i32
    %c0_i32_1 = arith.constant 0 : i32
    return %arg1, %c0_i32, %c0_i32_0 : i32, i32, i32
  }
  func.func @transform_16(%arg0: i32, %arg1: i32) -> (i32, i32, i32) {
    %c0_i32 = arith.constant 0 : i32
    %c0_i32_0 = arith.constant 0 : i32
    %c0_i32_1 = arith.constant 0 : i32
    return %arg1, %c0_i32, %c0_i32_0 : i32, i32, i32
  }
  func.func @transform_17(%arg0: i32, %arg1: i32) -> (i32, i32, i32) {
    %c0_i32 = arith.constant 0 : i32
    %c0_i32_0 = arith.constant 0 : i32
    %c0_i32_1 = arith.constant 0 : i32
    return %arg1, %c0_i32, %c0_i32_0 : i32, i32, i32
  }
  func.func @transform_18(%arg0: i32, %arg1: i32) -> (i32, i32, i32) {
    %c0_i32 = arith.constant 0 : i32
    %c0_i32_0 = arith.constant 0 : i32
    %c0_i32_1 = arith.constant 0 : i32
    return %arg1, %c0_i32, %c0_i32_0 : i32, i32, i32
  }
  func.func @transform_19(%arg0: i32, %arg1: i32) -> (i32, i32, i32, i32) {
    %c0_i32 = arith.constant 0 : i32
    %c0_i32_0 = arith.constant 0 : i32
    %c0_i32_1 = arith.constant 0 : i32
    return %arg1, %arg0, %c0_i32, %c0_i32_0 : i32, i32, i32, i32
  }
  func.func @transform_20(%arg0: i32, %arg1: i32) -> (i32, i32, i32, i32) {
    %c0_i32 = arith.constant 0 : i32
    %c0_i32_0 = arith.constant 0 : i32
    %c0_i32_1 = arith.constant 0 : i32
    return %arg1, %arg0, %c0_i32, %c0_i32_0 : i32, i32, i32, i32
  }
  func.func @transform_21(%arg0: i32, %arg1: i32) -> (i32, i32, i32, i32) {
    %c0_i32 = arith.constant 0 : i32
    %c0_i32_0 = arith.constant 0 : i32
    %c0_i32_1 = arith.constant 0 : i32
    return %arg1, %arg0, %c0_i32, %c0_i32_0 : i32, i32, i32, i32
  }
}

</mosaic_0001>

<llo_original>
// kernel: _fused_decoder_call.1
$region0: #{_fused_decoder_call.1}
  #allocation0 [shape = 'u32[]', space=smem, size = 0x4, offset = 0x4, fixed_abs, tag = 'smem constant byte address 0x4 - core index']
  #allocation1 [shape = 'u32[144,128]{1,0:T(1,128)}', space=vmem, size = 0x12000, scoped, tag = 'internal scratch']
  #allocation2 [shape = 'f32[1,8,32]{2,1,0:T(8,128)}', space=vmem, size = 0x1000, scoped, tag = 'scratch operand']
  %s0 = inlined_call_operand.hbm [shape: f32[2,8,32], index: 0, kind: input, shape index: {}]
  %s1 = inlined_call_operand.hbm [shape: bf16[2,16,32], index: 1, kind: input, shape index: {}]
  %s2 = inlined_call_operand.vmem [shape: bf16[2,1,32], index: 2, kind: input, shape index: {}]
  %s3 = inlined_call_operand.vmem [shape: bf16[2,32,32], index: 3, kind: input, shape index: {}]
  %s4 = inlined_call_operand.vmem [shape: f32[2,1,32], index: 4, kind: input, shape index: {}]
  %s5 = inlined_call_operand.vmem [shape: bf16[2,32,32], index: 5, kind: input, shape index: {}]
  %s6 = inlined_call_operand.vmem [shape: f32[2,1,32], index: 6, kind: input, shape index: {}]
  %s7 = inlined_call_operand.vmem [shape: bf16[2,32,32], index: 7, kind: input, shape index: {}]
  %s8 = inlined_call_operand.vmem [shape: f32[2,1,32], index: 8, kind: input, shape index: {}]
  %s9 = inlined_call_operand.vmem [shape: bf16[2,32,32], index: 9, kind: input, shape index: {}]
  %s10 = inlined_call_operand.vmem [shape: f32[2,1,32], index: 10, kind: input, shape index: {}]
  %s11 = inlined_call_operand.vmem [shape: f32[2,1,32], index: 11, kind: input, shape index: {}]
  %s12 = inlined_call_operand.vmem [shape: f32[2,1,32], index: 12, kind: input, shape index: {}]
  %s13 = inlined_call_operand.vmem [shape: bf16[2,32,128], index: 13, kind: input, shape index: {}]
  %s14 = inlined_call_operand.vmem [shape: f32[2,1,128], index: 14, kind: input, shape index: {}]
  %s15 = inlined_call_operand.vmem [shape: bf16[2,128,32], index: 15, kind: input, shape index: {}]
  %s16 = inlined_call_operand.vmem [shape: f32[2,1,32], index: 16, kind: input, shape index: {}]
  %s17 = inlined_call_operand.vmem [shape: f32[2,1,32], index: 17, kind: input, shape index: {}]
  %s18 = inlined_call_operand.vmem [shape: f32[2,1,32], index: 18, kind: input, shape index: {}]
  %s19 = inlined_call_operand.hbm [shape: f32[2,2,8,32], index: 19, kind: output, shape index: {0}]
  %s20 = inlined_call_operand.hbm [shape: f32[2,2,8,16], index: 20, kind: output, shape index: {1}]
  %s21 = inlined_call_operand.hbm [shape: f32[2,2,1,16], index: 21, kind: output, shape index: {2}]
  %22 = xla_tuple %s19, %s20, %s21
  %s23 = sld [smem:[#allocation0]]
  $region137: #{_fused_decoder_call.1} parent=0
    _
  %s25 = ssub.s32 1, %s23
  %s26 = scalar_select 0, %s25, %s23
  $region1: #{_fused_decoder_call.1} parent=0
    #allocation3 [shape = 'u8[8192]{0}', space=vmem, size = 0x2000, scoped, tag = 'input window, operand 0']
    #allocation4 [shape = 's32[2]{0}', space=sflag, size = 0x8, scoped, tag = 'scoped memory for _fused_decoder_call.1']
    #allocation5 [shape = 's32[2]{0}', space=sflag, size = 0x8, scoped, tag = 'scoped memory for _fused_decoder_call.1']
    #allocation6 [shape = 'u8[8192]{0}', space=vmem, size = 0x2000, scoped, tag = 'input window, operand 1']
    #allocation7 [shape = 's32[2]{0}', space=sflag, size = 0x8, scoped, tag = 'scoped memory for _fused_decoder_call.1']
    #allocation8 [shape = 'u8[8192]{0}', space=vmem, size = 0x2000, scoped, tag = 'output window, operand 0']
    #allocation9 [shape = 'u8[8192]{0}', space=vmem, size = 0x2000, scoped, tag = 'output window, operand 1']
    #allocation10 [shape = 's32[2]{0}', space=sflag, size = 0x8, scoped, tag = 'scoped memory for _fused_decoder_call.1']
    #allocation11 [shape = 'u8[1024]{0}', space=vmem, size = 0x400, scoped, tag = 'output window, operand 2']
    %27 = vsyncpa [#allocation4], 0
    %s28 = scalar_lea.sflag [#allocation4], 1
    %29 = vsyncpa %s28, 0
    %30 = vsyncpa [#allocation7], 0
    %s31 = scalar_lea.sflag [#allocation7], 1
    %32 = vsyncpa %s31, 0
    %33 = vsyncpa [#allocation5], 0
    %s34 = scalar_lea.sflag [#allocation5], 1
    %35 = vsyncpa %s34, 0
    %36 = vsyncpa [#allocation10], 0
    %s37 = scalar_lea.sflag [#allocation10], 1
    %38 = vsyncpa %s37, 0
    loop: start=0, step=1, limit=6
    $region2: #{_fused_decoder_call.1} parent=1 // loop_pre_header
      _
    $region3: #{_fused_decoder_call.1} parent=1 // loop_header
      %s40 = sphi 0, %s44
      %p41 = scmp.ge.s32.totalorder %s40, 6
      %s47 = sphi 0, %s59
      %s48 = sphi 0, %s55
      %s49 = sphi 0, %s47
      %s50 = sphi 0, %s48
      %s51 = sphi 0, %s49
      %s52 = sphi 0, %s50
      %s62 = sphi 0, %s64
      %s65 = sphi 0, %s62
      %s66 = sphi 0, %s65
      %s82 = sphi 0, %s66
      %s88 = sphi 0, %s90
      %s91 = sphi 0, %s88
      %s92 = sphi 0, %s91
      %s108 = sphi 0, %s92
      %s114 = sphi 0, %s116
      %s117 = sphi 0, %s114
      %s118 = sphi 0, %s117
      %s134 = sphi 0, %s118
      %s140 = sphi 0, %s142
      %s143 = sphi 0, %s140
      %s144 = sphi 0, %s143
      %s160 = sphi 0, %s144
      %s166 = sphi 0, %s168
      %s169 = sphi 0, %s166
      %s170 = sphi 0, %s169
      %s186 = sphi 0, %s170
      %s192 = sphi 0, %s194
      %s195 = sphi 0, %s192
      %s196 = sphi 0, %s195
      %s212 = sphi 0, %s196
      %s218 = sphi 0, %s220
      %s221 = sphi 0, %s218
      %s222 = sphi 0, %s221
      %s238 = sphi 0, %s222
      %s244 = sphi 0, %s246
      %s247 = sphi 0, %s244
      %s248 = sphi 0, %s247
      %s264 = sphi 0, %s248
      %s270 = sphi 0, %s272
      %s273 = sphi 0, %s270
      %s274 = sphi 0, %s273
      %s290 = sphi 0, %s274
      %s296 = sphi 0, %s298
      %s299 = sphi 0, %s296
      %s300 = sphi 0, %s299
      %s316 = sphi 0, %s300
      %s322 = sphi 0, %s324
      %s325 = sphi 0, %s322
      %s326 = sphi 0, %s325
      %s342 = sphi 0, %s326
      %s348 = sphi 0, %s350
      %s351 = sphi 0, %s348
      %s352 = sphi 0, %s351
      %s368 = sphi 0, %s352
      %s374 = sphi 0, %s376
      %s377 = sphi 0, %s374
      %s378 = sphi 0, %s377
      %s394 = sphi 0, %s378
      %s400 = sphi 0, %s402
      %s403 = sphi 0, %s400
      %s404 = sphi 0, %s403
      %s420 = sphi 0, %s404
      %s426 = sphi 0, %s428
      %s429 = sphi 0, %s426
      %s430 = sphi 0, %s429
      %s446 = sphi 0, %s430
      %s452 = sphi 0, %s454
      %s455 = sphi 0, %s452
      %s456 = sphi 0, %s455
      %s472 = sphi 0, %s456
      %s478 = sphi 0, %s480
      %s481 = sphi 0, %s478
      %s482 = sphi 0, %s481
      %s498 = sphi 0, %s482
      %s504 = sphi 0, %s506
      %s507 = sphi 0, %s504
      %s508 = sphi 0, %s507
      %s524 = sphi 0, %s508
      %s530 = sphi 0, %s532
      %s533 = sphi 0, %s530
      %s534 = sphi 0, %s533
      %s550 = sphi 0, %s534
      %s558 = sphi 0, %s560
      %s561 = sphi 0, %s558
      %s562 = sphi 0, %s561
      %s578 = sphi 0, %s562
      %s586 = sphi 0, %s588
      %s589 = sphi 0, %s586
      %s590 = sphi 0, %s589
      %s606 = sphi 0, %s590
      %s614 = sphi 0, %s616
      %s617 = sphi 0, %s614
      %s618 = sphi 0, %s617
      %s634 = sphi 0, %s618
    $region4: #{_fused_decoder_call.1} parent=1 // loop_header_branch
      %43 = sbr.rel (%p41) target = $region8
    $region5: #{_fused_decoder_call.1} parent=1 // loop_body
      %s45 = ssub.s32 %s40, 1
      %s46 = ssub.s32 %s40, 2
      %s53 = sadd.s32 1, %s48
      %p54 = scmp.ge.s32.totalorder %s53, 2
      %s55 = scalar_select %p54, 0, %s53
      %s56 = sadd.s32 1, %s47
      %s57 = scalar_select %p54, %s56, %s47
      %p58 = scmp.ge.s32.totalorder %s57, 2
      %s59 = scalar_select %p58, 0, %s57
      %s60 = ssub.s32 %s47, %s59
      %p61 = scmp.eq.s32.totalorder %s60, 0
      %s63 = sadd.s32 %s62, 1
      %s64 = scalar_select %p61, %s62, %s63
      %p67 = pneg %p61
      %p68 = scmp.eq.s32.totalorder %s40, 3
      %p69 = por %p67, %p68
      %p70 = scmp.ne.s32.totalorder %s62, %s65
      %p71 = scmp.eq.s32.totalorder %s40, 0
      %p72 = por %p70, %p71
      %p73 = scmp.ne.s32.totalorder %s62, %s65
      %p74 = scmp.eq.s32.totalorder %s45, 3
      %p75 = por %p73, %p74
      %p76 = scmp.ne.s32.totalorder %s65, %s66
      %p77 = scmp.eq.s32.totalorder %s45, 0
      %p78 = por %p76, %p77
      %p79 = scmp.ne.s32.totalorder %s65, %s66
      %p80 = scmp.eq.s32.totalorder %s46, 3
      %p81 = por %p79, %p80
      %p83 = scmp.ne.s32.totalorder %s66, %s82
      %p84 = scmp.eq.s32.totalorder %s46, 0
      %p85 = por %p83, %p84
      %s86 = ssub.s32 %s47, %s59
      %p87 = scmp.eq.s32.totalorder %s86, 0
      %s89 = sadd.s32 %s88, 1
      %s90 = scalar_select %p87, %s88, %s89
      %p93 = pneg %p87
      %p94 = scmp.eq.s32.totalorder %s40, 3
      %p95 = por %p93, %p94
      %p96 = scmp.ne.s32.totalorder %s88, %s91
      %p97 = scmp.eq.s32.totalorder %s40, 0
      %p98 = por %p96, %p97
      %p99 = scmp.ne.s32.totalorder %s88, %s91
      %p100 = scmp.eq.s32.totalorder %s45, 3
      %p101 = por %p99, %p100
      %p102 = scmp.ne.s32.totalorder %s91, %s92
      %p103 = scmp.eq.s32.totalorder %s45, 0
      %p104 = por %p102, %p103
      %p105 = scmp.ne.s32.totalorder %s91, %s92
      %p106 = scmp.eq.s32.totalorder %s46, 3
      %p107 = por %p105, %p106
      %p109 = scmp.ne.s32.totalorder %s92, %s108
      %p110 = scmp.eq.s32.totalorder %s46, 0
      %p111 = por %p109, %p110
      %s112 = ssub.s32 %s47, %s59
      %p113 = scmp.eq.s32.totalorder %s112, 0
      %s115 = sadd.s32 %s114, 1
      %s116 = scalar_select %p113, %s114, %s115
      %p119 = pneg %p113
      %p120 = scmp.eq.s32.totalorder %s40, 3
      %p121 = por %p119, %p120
      %p122 = scmp.ne.s32.totalorder %s114, %s117
      %p123 = scmp.eq.s32.totalorder %s40, 0
      %p124 = por %p122, %p123
      %p125 = scmp.ne.s32.totalorder %s114, %s117
      %p126 = scmp.eq.s32.totalorder %s45, 3
      %p127 = por %p125, %p126
      %p128 = scmp.ne.s32.totalorder %s117, %s118
      %p129 = scmp.eq.s32.totalorder %s45, 0
      %p130 = por %p128, %p129
      %p131 = scmp.ne.s32.totalorder %s117, %s118
      %p132 = scmp.eq.s32.totalorder %s46, 3
      %p133 = por %p131, %p132
      %p135 = scmp.ne.s32.totalorder %s118, %s134
      %p136 = scmp.eq.s32.totalorder %s46, 0
      %p137 = por %p135, %p136
      %s138 = ssub.s32 %s48, %s55
      %p139 = scmp.eq.s32.totalorder %s138, 0
      %s141 = sadd.s32 %s140, 1
      %s142 = scalar_select %p139, %s140, %s141
      %p145 = pneg %p139
      %p146 = scmp.eq.s32.totalorder %s40, 3
      %p147 = por %p145, %p146
      %p148 = scmp.ne.s32.totalorder %s140, %s143
      %p149 = scmp.eq.s32.totalorder %s40, 0
      %p150 = por %p148, %p149
      %p151 = scmp.ne.s32.totalorder %s140, %s143
      %p152 = scmp.eq.s32.totalorder %s45, 3
      %p153 = por %p151, %p152
      %p154 = scmp.ne.s32.totalorder %s143, %s144
      %p155 = scmp.eq.s32.totalorder %s45, 0
      %p156 = por %p154, %p155
      %p157 = scmp.ne.s32.totalorder %s143, %s144
      %p158 = scmp.eq.s32.totalorder %s46, 3
      %p159 = por %p157, %p158
      %p161 = scmp.ne.s32.totalorder %s144, %s160
      %p162 = scmp.eq.s32.totalorder %s46, 0
      %p163 = por %p161, %p162
      %s164 = ssub.s32 %s48, %s55
      %p165 = scmp.eq.s32.totalorder %s164, 0
      %s167 = sadd.s32 %s166, 1
      %s168 = scalar_select %p165, %s166, %s167
      %p171 = pneg %p165
      %p172 = scmp.eq.s32.totalorder %s40, 3
      %p173 = por %p171, %p172
      %p174 = scmp.ne.s32.totalorder %s166, %s169
      %p175 = scmp.eq.s32.totalorder %s40, 0
      %p176 = por %p174, %p175
      %p177 = scmp.ne.s32.totalorder %s166, %s169
      %p178 = scmp.eq.s32.totalorder %s45, 3
      %p179 = por %p177, %p178
      %p180 = scmp.ne.s32.totalorder %s169, %s170
      %p181 = scmp.eq.s32.totalorder %s45, 0
      %p182 = por %p180, %p181
      %p183 = scmp.ne.s32.totalorder %s169, %s170
      %p184 = scmp.eq.s32.totalorder %s46, 3
      %p185 = por %p183, %p184
      %p187 = scmp.ne.s32.totalorder %s170, %s186
      %p188 = scmp.eq.s32.totalorder %s46, 0
      %p189 = por %p187, %p188
      %s190 = ssub.s32 %s48, %s55
      %p191 = scmp.eq.s32.totalorder %s190, 0
      %s193 = sadd.s32 %s192, 1
      %s194 = scalar_select %p191, %s192, %s193
      %p197 = pneg %p191
      %p198 = scmp.eq.s32.totalorder %s40, 3
      %p199 = por %p197, %p198
      %p200 = scmp.ne.s32.totalorder %s192, %s195
      %p201 = scmp.eq.s32.totalorder %s40, 0
      %p202 = por %p200, %p201
      %p203 = scmp.ne.s32.totalorder %s192, %s195
      %p204 = scmp.eq.s32.totalorder %s45, 3
      %p205 = por %p203, %p204
      %p206 = scmp.ne.s32.totalorder %s195, %s196
      %p207 = scmp.eq.s32.totalorder %s45, 0
      %p208 = por %p206, %p207
      %p209 = scmp.ne.s32.totalorder %s195, %s196
      %p210 = scmp.eq.s32.totalorder %s46, 3
      %p211 = por %p209, %p210
      %p213 = scmp.ne.s32.totalorder %s196, %s212
      %p214 = scmp.eq.s32.totalorder %s46, 0
      %p215 = por %p213, %p214
      %s216 = ssub.s32 %s48, %s55
      %p217 = scmp.eq.s32.totalorder %s216, 0
      %s219 = sadd.s32 %s218, 1
      %s220 = scalar_select %p217, %s218, %s219
      %p223 = pneg %p217
      %p224 = scmp.eq.s32.totalorder %s40, 3
      %p225 = por %p223, %p224
      %p226 = scmp.ne.s32.totalorder %s218, %s221
      %p227 = scmp.eq.s32.totalorder %s40, 0
      %p228 = por %p226, %p227
      %p229 = scmp.ne.s32.totalorder %s218, %s221
      %p230 = scmp.eq.s32.totalorder %s45, 3
      %p231 = por %p229, %p230
      %p232 = scmp.ne.s32.totalorder %s221, %s222
      %p233 = scmp.eq.s32.totalorder %s45, 0
      %p234 = por %p232, %p233
      %p235 = scmp.ne.s32.totalorder %s221, %s222
      %p236 = scmp.eq.s32.totalorder %s46, 3
      %p237 = por %p235, %p236
      %p239 = scmp.ne.s32.totalorder %s222, %s238
      %p240 = scmp.eq.s32.totalorder %s46, 0
      %p241 = por %p239, %p240
      %s242 = ssub.s32 %s48, %s55
      %p243 = scmp.eq.s32.totalorder %s242, 0
      %s245 = sadd.s32 %s244, 1
      %s246 = scalar_select %p243, %s244, %s245
      %p249 = pneg %p243
      %p250 = scmp.eq.s32.totalorder %s40, 3
      %p251 = por %p249, %p250
      %p252 = scmp.ne.s32.totalorder %s244, %s247
      %p253 = scmp.eq.s32.totalorder %s40, 0
      %p254 = por %p252, %p253
      %p255 = scmp.ne.s32.totalorder %s244, %s247
      %p256 = scmp.eq.s32.totalorder %s45, 3
      %p257 = por %p255, %p256
      %p258 = scmp.ne.s32.totalorder %s247, %s248
      %p259 = scmp.eq.s32.totalorder %s45, 0
      %p260 = por %p258, %p259
      %p261 = scmp.ne.s32.totalorder %s247, %s248
      %p262 = scmp.eq.s32.totalorder %s46, 3
      %p263 = por %p261, %p262
      %p265 = scmp.ne.s32.totalorder %s248, %s264
      %p266 = scmp.eq.s32.totalorder %s46, 0
      %p267 = por %p265, %p266
      %s268 = ssub.s32 %s48, %s55
      %p269 = scmp.eq.s32.totalorder %s268, 0
      %s271 = sadd.s32 %s270, 1
      %s272 = scalar_select %p269, %s270, %s271
      %p275 = pneg %p269
      %p276 = scmp.eq.s32.totalorder %s40, 3
      %p277 = por %p275, %p276
      %p278 = scmp.ne.s32.totalorder %s270, %s273
      %p279 = scmp.eq.s32.totalorder %s40, 0
      %p280 = por %p278, %p279
      %p281 = scmp.ne.s32.totalorder %s270, %s273
      %p282 = scmp.eq.s32.totalorder %s45, 3
      %p283 = por %p281, %p282
      %p284 = scmp.ne.s32.totalorder %s273, %s274
      %p285 = scmp.eq.s32.totalorder %s45, 0
      %p286 = por %p284, %p285
      %p287 = scmp.ne.s32.totalorder %s273, %s274
      %p288 = scmp.eq.s32.totalorder %s46, 3
      %p289 = por %p287, %p288
      %p291 = scmp.ne.s32.totalorder %s274, %s290
      %p292 = scmp.eq.s32.totalorder %s46, 0
      %p293 = por %p291, %p292
      %s294 = ssub.s32 %s48, %s55
      %p295 = scmp.eq.s32.totalorder %s294, 0
      %s297 = sadd.s32 %s296, 1
      %s298 = scalar_select %p295, %s296, %s297
      %p301 = pneg %p295
      %p302 = scmp.eq.s32.totalorder %s40, 3
      %p303 = por %p301, %p302
      %p304 = scmp.ne.s32.totalorder %s296, %s299
      %p305 = scmp.eq.s32.totalorder %s40, 0
      %p306 = por %p304, %p305
      %p307 = scmp.ne.s32.totalorder %s296, %s299
      %p308 = scmp.eq.s32.totalorder %s45, 3
      %p309 = por %p307, %p308
      %p310 = scmp.ne.s32.totalorder %s299, %s300
      %p311 = scmp.eq.s32.totalorder %s45, 0
      %p312 = por %p310, %p311
      %p313 = scmp.ne.s32.totalorder %s299, %s300
      %p314 = scmp.eq.s32.totalorder %s46, 3
      %p315 = por %p313, %p314
      %p317 = scmp.ne.s32.totalorder %s300, %s316
      %p318 = scmp.eq.s32.totalorder %s46, 0
      %p319 = por %p317, %p318
      %s320 = ssub.s32 %s48, %s55
      %p321 = scmp.eq.s32.totalorder %s320, 0
      %s323 = sadd.s32 %s322, 1
      %s324 = scalar_select %p321, %s322, %s323
      %p327 = pneg %p321
      %p328 = scmp.eq.s32.totalorder %s40, 3
      %p329 = por %p327, %p328
      %p330 = scmp.ne.s32.totalorder %s322, %s325
      %p331 = scmp.eq.s32.totalorder %s40, 0
      %p332 = por %p330, %p331
      %p333 = scmp.ne.s32.totalorder %s322, %s325
      %p334 = scmp.eq.s32.totalorder %s45, 3
      %p335 = por %p333, %p334
      %p336 = scmp.ne.s32.totalorder %s325, %s326
      %p337 = scmp.eq.s32.totalorder %s45, 0
      %p338 = por %p336, %p337
      %p339 = scmp.ne.s32.totalorder %s325, %s326
      %p340 = scmp.eq.s32.totalorder %s46, 3
      %p341 = por %p339, %p340
      %p343 = scmp.ne.s32.totalorder %s326, %s342
      %p344 = scmp.eq.s32.totalorder %s46, 0
      %p345 = por %p343, %p344
      %s346 = ssub.s32 %s48, %s55
      %p347 = scmp.eq.s32.totalorder %s346, 0
      %s349 = sadd.s32 %s348, 1
      %s350 = scalar_select %p347, %s348, %s349
      %p353 = pneg %p347
      %p354 = scmp.eq.s32.totalorder %s40, 3
      %p355 = por %p353, %p354
      %p356 = scmp.ne.s32.totalorder %s348, %s351
      %p357 = scmp.eq.s32.totalorder %s40, 0
      %p358 = por %p356, %p357
      %p359 = scmp.ne.s32.totalorder %s348, %s351
      %p360 = scmp.eq.s32.totalorder %s45, 3
      %p361 = por %p359, %p360
      %p362 = scmp.ne.s32.totalorder %s351, %s352
      %p363 = scmp.eq.s32.totalorder %s45, 0
      %p364 = por %p362, %p363
      %p365 = scmp.ne.s32.totalorder %s351, %s352
      %p366 = scmp.eq.s32.totalorder %s46, 3
      %p367 = por %p365, %p366
      %p369 = scmp.ne.s32.totalorder %s352, %s368
      %p370 = scmp.eq.s32.totalorder %s46, 0
      %p371 = por %p369, %p370
      %s372 = ssub.s32 %s48, %s55
      %p373 = scmp.eq.s32.totalorder %s372, 0
      %s375 = sadd.s32 %s374, 1
      %s376 = scalar_select %p373, %s374, %s375
      %p379 = pneg %p373
      %p380 = scmp.eq.s32.totalorder %s40, 3
      %p381 = por %p379, %p380
      %p382 = scmp.ne.s32.totalorder %s374, %s377
      %p383 = scmp.eq.s32.totalorder %s40, 0
      %p384 = por %p382, %p383
      %p385 = scmp.ne.s32.totalorder %s374, %s377
      %p386 = scmp.eq.s32.totalorder %s45, 3
      %p387 = por %p385, %p386
      %p388 = scmp.ne.s32.totalorder %s377, %s378
      %p389 = scmp.eq.s32.totalorder %s45, 0
      %p390 = por %p388, %p389
      %p391 = scmp.ne.s32.totalorder %s377, %s378
      %p392 = scmp.eq.s32.totalorder %s46, 3
      %p393 = por %p391, %p392
      %p395 = scmp.ne.s32.totalorder %s378, %s394
      %p396 = scmp.eq.s32.totalorder %s46, 0
      %p397 = por %p395, %p396
      %s398 = ssub.s32 %s48, %s55
      %p399 = scmp.eq.s32.totalorder %s398, 0
      %s401 = sadd.s32 %s400, 1
      %s402 = scalar_select %p399, %s400, %s401
      %p405 = pneg %p399
      %p406 = scmp.eq.s32.totalorder %s40, 3
      %p407 = por %p405, %p406
      %p408 = scmp.ne.s32.totalorder %s400, %s403
      %p409 = scmp.eq.s32.totalorder %s40, 0
      %p410 = por %p408, %p409
      %p411 = scmp.ne.s32.totalorder %s400, %s403
      %p412 = scmp.eq.s32.totalorder %s45, 3
      %p413 = por %p411, %p412
      %p414 = scmp.ne.s32.totalorder %s403, %s404
      %p415 = scmp.eq.s32.totalorder %s45, 0
      %p416 = por %p414, %p415
      %p417 = scmp.ne.s32.totalorder %s403, %s404
      %p418 = scmp.eq.s32.totalorder %s46, 3
      %p419 = por %p417, %p418
      %p421 = scmp.ne.s32.totalorder %s404, %s420
      %p422 = scmp.eq.s32.totalorder %s46, 0
      %p423 = por %p421, %p422
      %s424 = ssub.s32 %s48, %s55
      %p425 = scmp.eq.s32.totalorder %s424, 0
      %s427 = sadd.s32 %s426, 1
      %s428 = scalar_select %p425, %s426, %s427
      %p431 = pneg %p425
      %p432 = scmp.eq.s32.totalorder %s40, 3
      %p433 = por %p431, %p432
      %p434 = scmp.ne.s32.totalorder %s426, %s429
      %p435 = scmp.eq.s32.totalorder %s40, 0
      %p436 = por %p434, %p435
      %p437 = scmp.ne.s32.totalorder %s426, %s429
      %p438 = scmp.eq.s32.totalorder %s45, 3
      %p439 = por %p437, %p438
      %p440 = scmp.ne.s32.totalorder %s429, %s430
      %p441 = scmp.eq.s32.totalorder %s45, 0
      %p442 = por %p440, %p441
      %p443 = scmp.ne.s32.totalorder %s429, %s430
      %p444 = scmp.eq.s32.totalorder %s46, 3
      %p445 = por %p443, %p444
      %p447 = scmp.ne.s32.totalorder %s430, %s446
      %p448 = scmp.eq.s32.totalorder %s46, 0
      %p449 = por %p447, %p448
      %s450 = ssub.s32 %s48, %s55
      %p451 = scmp.eq.s32.totalorder %s450, 0
      %s453 = sadd.s32 %s452, 1
      %s454 = scalar_select %p451, %s452, %s453
      %p457 = pneg %p451
      %p458 = scmp.eq.s32.totalorder %s40, 3
      %p459 = por %p457, %p458
      %p460 = scmp.ne.s32.totalorder %s452, %s455
      %p461 = scmp.eq.s32.totalorder %s40, 0
      %p462 = por %p460, %p461
      %p463 = scmp.ne.s32.totalorder %s452, %s455
      %p464 = scmp.eq.s32.totalorder %s45, 3
      %p465 = por %p463, %p464
      %p466 = scmp.ne.s32.totalorder %s455, %s456
      %p467 = scmp.eq.s32.totalorder %s45, 0
      %p468 = por %p466, %p467
      %p469 = scmp.ne.s32.totalorder %s455, %s456
      %p470 = scmp.eq.s32.totalorder %s46, 3
      %p471 = por %p469, %p470
      %p473 = scmp.ne.s32.totalorder %s456, %s472
      %p474 = scmp.eq.s32.totalorder %s46, 0
      %p475 = por %p473, %p474
      %s476 = ssub.s32 %s48, %s55
      %p477 = scmp.eq.s32.totalorder %s476, 0
      %s479 = sadd.s32 %s478, 1
      %s480 = scalar_select %p477, %s478, %s479
      %p483 = pneg %p477
      %p484 = scmp.eq.s32.totalorder %s40, 3
      %p485 = por %p483, %p484
      %p486 = scmp.ne.s32.totalorder %s478, %s481
      %p487 = scmp.eq.s32.totalorder %s40, 0
      %p488 = por %p486, %p487
      %p489 = scmp.ne.s32.totalorder %s478, %s481
      %p490 = scmp.eq.s32.totalorder %s45, 3
      %p491 = por %p489, %p490
      %p492 = scmp.ne.s32.totalorder %s481, %s482
      %p493 = scmp.eq.s32.totalorder %s45, 0
      %p494 = por %p492, %p493
      %p495 = scmp.ne.s32.totalorder %s481, %s482
      %p496 = scmp.eq.s32.totalorder %s46, 3
      %p497 = por %p495, %p496
      %p499 = scmp.ne.s32.totalorder %s482, %s498
      %p500 = scmp.eq.s32.totalorder %s46, 0
      %p501 = por %p499, %p500
      %s502 = ssub.s32 %s48, %s55
      %p503 = scmp.eq.s32.totalorder %s502, 0
      %s505 = sadd.s32 %s504, 1
      %s506 = scalar_select %p503, %s504, %s505
      %p509 = pneg %p503
      %p510 = scmp.eq.s32.totalorder %s40, 3
      %p511 = por %p509, %p510
      %p512 = scmp.ne.s32.totalorder %s504, %s507
      %p513 = scmp.eq.s32.totalorder %s40, 0
      %p514 = por %p512, %p513
      %p515 = scmp.ne.s32.totalorder %s504, %s507
      %p516 = scmp.eq.s32.totalorder %s45, 3
      %p517 = por %p515, %p516
      %p518 = scmp.ne.s32.totalorder %s507, %s508
      %p519 = scmp.eq.s32.totalorder %s45, 0
      %p520 = por %p518, %p519
      %p521 = scmp.ne.s32.totalorder %s507, %s508
      %p522 = scmp.eq.s32.totalorder %s46, 3
      %p523 = por %p521, %p522
      %p525 = scmp.ne.s32.totalorder %s508, %s524
      %p526 = scmp.eq.s32.totalorder %s46, 0
      %p527 = por %p525, %p526
      %s528 = ssub.s32 %s48, %s55
      %p529 = scmp.eq.s32.totalorder %s528, 0
      %s531 = sadd.s32 %s530, 1
      %s532 = scalar_select %p529, %s530, %s531
      %p535 = pneg %p529
      %p536 = scmp.eq.s32.totalorder %s40, 3
      %p537 = por %p535, %p536
      %p538 = scmp.ne.s32.totalorder %s530, %s533
      %p539 = scmp.eq.s32.totalorder %s40, 0
      %p540 = por %p538, %p539
      %p541 = scmp.ne.s32.totalorder %s530, %s533
      %p542 = scmp.eq.s32.totalorder %s45, 3
      %p543 = por %p541, %p542
      %p544 = scmp.ne.s32.totalorder %s533, %s534
      %p545 = scmp.eq.s32.totalorder %s45, 0
      %p546 = por %p544, %p545
      %p547 = scmp.ne.s32.totalorder %s533, %s534
      %p548 = scmp.eq.s32.totalorder %s46, 3
      %p549 = por %p547, %p548
      %p551 = scmp.ne.s32.totalorder %s534, %s550
      %p552 = scmp.eq.s32.totalorder %s46, 0
      %p553 = por %p551, %p552
      %s554 = ssub.s32 %s48, %s55
      %s555 = ssub.s32 %s47, %s59
      %s556 = sor.u32 %s554, %s555
      %p557 = scmp.eq.s32.totalorder %s556, 0
      %s559 = sadd.s32 %s558, 1
      %s560 = scalar_select %p557, %s558, %s559
      %p563 = pneg %p557
      %p564 = scmp.eq.s32.totalorder %s40, 3
      %p565 = por %p563, %p564
      %p566 = scmp.ne.s32.totalorder %s558, %s561
      %p567 = scmp.eq.s32.totalorder %s40, 0
      %p568 = por %p566, %p567
      %p569 = scmp.ne.s32.totalorder %s558, %s561
      %p570 = scmp.eq.s32.totalorder %s45, 3
      %p571 = por %p569, %p570
      %p572 = scmp.ne.s32.totalorder %s561, %s562
      %p573 = scmp.eq.s32.totalorder %s45, 0
      %p574 = por %p572, %p573
      %p575 = scmp.ne.s32.totalorder %s561, %s562
      %p576 = scmp.eq.s32.totalorder %s46, 3
      %p577 = por %p575, %p576
      %p579 = scmp.ne.s32.totalorder %s562, %s578
      %p580 = scmp.eq.s32.totalorder %s46, 0
      %p581 = por %p579, %p580
      %s582 = ssub.s32 %s48, %s55
      %s583 = ssub.s32 %s47, %s59
      %s584 = sor.u32 %s582, %s583
      %p585 = scmp.eq.s32.totalorder %s584, 0
      %s587 = sadd.s32 %s586, 1
      %s588 = scalar_select %p585, %s586, %s587
      %p591 = pneg %p585
      %p592 = scmp.eq.s32.totalorder %s40, 3
      %p593 = por %p591, %p592
      %p594 = scmp.ne.s32.totalorder %s586, %s589
      %p595 = scmp.eq.s32.totalorder %s40, 0
      %p596 = por %p594, %p595
      %p597 = scmp.ne.s32.totalorder %s586, %s589
      %p598 = scmp.eq.s32.totalorder %s45, 3
      %p599 = por %p597, %p598
      %p600 = scmp.ne.s32.totalorder %s589, %s590
      %p601 = scmp.eq.s32.totalorder %s45, 0
      %p602 = por %p600, %p601
      %p603 = scmp.ne.s32.totalorder %s589, %s590
      %p604 = scmp.eq.s32.totalorder %s46, 3
      %p605 = por %p603, %p604
      %p607 = scmp.ne.s32.totalorder %s590, %s606
      %p608 = scmp.eq.s32.totalorder %s46, 0
      %p609 = por %p607, %p608
      %s610 = ssub.s32 %s48, %s55
      %s611 = ssub.s32 %s47, %s59
      %s612 = sor.u32 %s610, %s611
      %p613 = scmp.eq.s32.totalorder %s612, 0
      %s615 = sadd.s32 %s614, 1
      %s616 = scalar_select %p613, %s614, %s615
      %p619 = pneg %p613
      %p620 = scmp.eq.s32.totalorder %s40, 3
      %p621 = por %p619, %p620
      %p622 = scmp.ne.s32.totalorder %s614, %s617
      %p623 = scmp.eq.s32.totalorder %s40, 0
      %p624 = por %p622, %p623
      %p625 = scmp.ne.s32.totalorder %s614, %s617
      %p626 = scmp.eq.s32.totalorder %s45, 3
      %p627 = por %p625, %p626
      %p628 = scmp.ne.s32.totalorder %s617, %s618
      %p629 = scmp.eq.s32.totalorder %s45, 0
      %p630 = por %p628, %p629
      %p631 = scmp.ne.s32.totalorder %s617, %s618
      %p632 = scmp.eq.s32.totalorder %s46, 3
      %p633 = por %p631, %p632
      %p635 = scmp.ne.s32.totalorder %s618, %s634
      %p636 = scmp.eq.s32.totalorder %s46, 0
      %p637 = por %p635, %p636
      %p638 = scmp.le.s32.totalorder 1, %s40
      %p639 = scmp.lt.s32.totalorder %s40, 5
      %p640 = pnand %p638, %p639
      %p641 = pneg %p640
      // Predicated region
      $region9: #{_fused_decoder_call.1} parent=5 // pred_check
        _
      $region10: #{_fused_decoder_call.1} parent=5 // pred_check_branch
        %643 = sbr.rel (%p640) target = $region12
      $region11: #{_fused_decoder_call.1} parent=5 // pred_region
        %s644 = ssub.s32 %s40, 1
      $region12: #{_fused_decoder_call.1} parent=5 // pred_fallthru
        _
      %p645 = scmp.lt.s32.totalorder %s40, 4
      // Predicated region
      $region13: #{_fused_decoder_call.1} parent=5 // pred_check
        %p646 = pneg %p645
      $region14: #{_fused_decoder_call.1} parent=5 // pred_check_branch
        %648 = sbr.rel (%p646) target = $region16
      $region15: #{_fused_decoder_call.1} parent=5 // pred_region
        // Predicated region
        $region17: #{_fused_decoder_call.1} parent=15 // pred_check
          %p649 = pneg %p72
        $region18: #{_fused_decoder_call.1} parent=15 // pred_check_branch
          %651 = sbr.rel (%p649) target = $region20
        $region19: #{_fused_decoder_call.1} parent=15 // pred_region
          %s652 = sand.u32 %s62, 1
          %s653 = scalar_lea.sflag [#allocation4], %s652
          %s654 = sand.u32 %s62, 1
          %s655 = smul.addr %s654, 8
          %s656 = scalar_lea.vmem [#allocation3], %s655
          %s658 = ssub.s32 128, 128
          %659 = vsyncadd %s653, %s658
          %s660 = smul.addr %s47, 128
          %s661 = scalar_lea.hbm %s0, %s660
          %s663 = sshll.u32 %s656, 4
          %s664 = int_to_ptr.vmem [resolvable:$true] %s663
          %666 = dma.hbm_to_vmem [thread:$0]  %s661, 128, %s664, %s653
        $region20: #{_fused_decoder_call.1} parent=15 // pred_fallthru
          _
        // Predicated region
        $region21: #{_fused_decoder_call.1} parent=15 // pred_check
          %p667 = pneg %p98
        $region22: #{_fused_decoder_call.1} parent=15 // pred_check_branch
          %669 = sbr.rel (%p667) target = $region24
        $region23: #{_fused_decoder_call.1} parent=15 // pred_region
          %s670 = sand.u32 %s88, 1
          %s671 = scalar_lea.sflag [#allocation7], %s670
          %s672 = sand.u32 %s88, 1
          %s673 = smul.addr %s672, 8
          %s674 = scalar_lea.vmem [#allocation6], %s673
          %s676 = ssub.s32 128, 128
          %677 = vsyncadd %s671, %s676
          %s678 = smul.addr %s47, 2
          %s679 = smul.addr %s678, 64
          %s680 = scalar_lea.hbm %s1, %s679
          %s681 = sshll.u32 %s674, 4
          %s682 = int_to_ptr.vmem [resolvable:$true] %s681
          %687 = dma.hbm_to_vmem [thread:$0]  %s680, 128, %s682, %s671, 64, 64, 4
        $region24: #{_fused_decoder_call.1} parent=15 // pred_fallthru
          _
        // Predicated region
        $region25: #{_fused_decoder_call.1} parent=15 // pred_check
          %p688 = pneg %p124
        $region26: #{_fused_decoder_call.1} parent=15 // pred_check_branch
          %690 = sbr.rel (%p688) target = $region28
        $region27: #{_fused_decoder_call.1} parent=15 // pred_region
          %p691 = scmp.lt.s32.totalorder %s47, 1
          %s692 = scalar_select %p691, %s47, 1
          %s693 = scalar_lea.vmem %s2, %s692
        $region28: #{_fused_decoder_call.1} parent=15 // pred_fallthru
          _
        // Predicated region
        $region29: #{_fused_decoder_call.1} parent=15 // pred_check
          %p694 = pneg %p150
        $region30: #{_fused_decoder_call.1} parent=15 // pred_check_branch
          %696 = sbr.rel (%p694) target = $region32
        $region31: #{_fused_decoder_call.1} parent=15 // pred_region
          %p697 = scmp.lt.s32.totalorder %s48, 1
          %s698 = scalar_select %p697, %s48, 1
          %s699 = smul.addr %s698, 4
          %s700 = smul.addr %s699, 4
          %s701 = scalar_lea.vmem %s3, %s700
        $region32: #{_fused_decoder_call.1} parent=15 // pred_fallthru
          _
        // Predicated region
        $region33: #{_fused_decoder_call.1} parent=15 // pred_check
          %p702 = pneg %p176
        $region34: #{_fused_decoder_call.1} parent=15 // pred_check_branch
          %704 = sbr.rel (%p702) target = $region36
        $region35: #{_fused_decoder_call.1} parent=15 // pred_region
          %p705 = scmp.lt.s32.totalorder %s48, 1
          %s706 = scalar_select %p705, %s48, 1
          %s707 = scalar_lea.vmem %s4, %s706
        $region36: #{_fused_decoder_call.1} parent=15 // pred_fallthru
          _
        // Predicated region
        $region37: #{_fused_decoder_call.1} parent=15 // pred_check
          %p708 = pneg %p202
        $region38: #{_fused_decoder_call.1} parent=15 // pred_check_branch
          %710 = sbr.rel (%p708) target = $region40
        $region39: #{_fused_decoder_call.1} parent=15 // pred_region
          %p711 = scmp.lt.s32.totalorder %s48, 1
          %s712 = scalar_select %p711, %s48, 1
          %s713 = smul.addr %s712, 4
          %s714 = smul.addr %s713, 4
          %s715 = scalar_lea.vmem %s5, %s714
        $region40: #{_fused_decoder_call.1} parent=15 // pred_fallthru
          _
        // Predicated region
        $region41: #{_fused_decoder_call.1} parent=15 // pred_check
          %p716 = pneg %p228
        $region42: #{_fused_decoder_call.1} parent=15 // pred_check_branch
          %718 = sbr.rel (%p716) target = $region44
        $region43: #{_fused_decoder_call.1} parent=15 // pred_region
          %p719 = scmp.lt.s32.totalorder %s48, 1
          %s720 = scalar_select %p719, %s48, 1
          %s721 = scalar_lea.vmem %s6, %s720
        $region44: #{_fused_decoder_call.1} parent=15 // pred_fallthru
          _
        // Predicated region
        $region45: #{_fused_decoder_call.1} parent=15 // pred_check
          %p722 = pneg %p254
        $region46: #{_fused_decoder_call.1} parent=15 // pred_check_branch
          %724 = sbr.rel (%p722) target = $region48
        $region47: #{_fused_decoder_call.1} parent=15 // pred_region
          %p725 = scmp.lt.s32.totalorder %s48, 1
          %s726 = scalar_select %p725, %s48, 1
          %s727 = smul.addr %s726, 4
          %s728 = smul.addr %s727, 4
          %s729 = scalar_lea.vmem %s7, %s728
        $region48: #{_fused_decoder_call.1} parent=15 // pred_fallthru
          _
        // Predicated region
        $region49: #{_fused_decoder_call.1} parent=15 // pred_check
          %p730 = pneg %p280
        $region50: #{_fused_decoder_call.1} parent=15 // pred_check_branch
          %732 = sbr.rel (%p730) target = $region52
        $region51: #{_fused_decoder_call.1} parent=15 // pred_region
          %p733 = scmp.lt.s32.totalorder %s48, 1
          %s734 = scalar_select %p733, %s48, 1
          %s735 = scalar_lea.vmem %s8, %s734
        $region52: #{_fused_decoder_call.1} parent=15 // pred_fallthru
          _
        // Predicated region
        $region53: #{_fused_decoder_call.1} parent=15 // pred_check
          %p736 = pneg %p306
        $region54: #{_fused_decoder_call.1} parent=15 // pred_check_branch
          %738 = sbr.rel (%p736) target = $region56
        $region55: #{_fused_decoder_call.1} parent=15 // pred_region
          %p739 = scmp.lt.s32.totalorder %s48, 1
          %s740 = scalar_select %p739, %s48, 1
          %s741 = smul.addr %s740, 4
          %s742 = smul.addr %s741, 4
          %s743 = scalar_lea.vmem %s9, %s742
        $region56: #{_fused_decoder_call.1} parent=15 // pred_fallthru
          _
        // Predicated region
        $region57: #{_fused_decoder_call.1} parent=15 // pred_check
          %p744 = pneg %p332
        $region58: #{_fused_decoder_call.1} parent=15 // pred_check_branch
          %746 = sbr.rel (%p744) target = $region60
        $region59: #{_fused_decoder_call.1} parent=15 // pred_region
          %p747 = scmp.lt.s32.totalorder %s48, 1
          %s748 = scalar_select %p747, %s48, 1
          %s749 = scalar_lea.vmem %s10, %s748
        $region60: #{_fused_decoder_call.1} parent=15 // pred_fallthru
          _
        // Predicated region
        $region61: #{_fused_decoder_call.1} parent=15 // pred_check
          %p750 = pneg %p358
        $region62: #{_fused_decoder_call.1} parent=15 // pred_check_branch
          %752 = sbr.rel (%p750) target = $region64
        $region63: #{_fused_decoder_call.1} parent=15 // pred_region
          %p753 = scmp.lt.s32.totalorder %s48, 1
          %s754 = scalar_select %p753, %s48, 1
          %s755 = scalar_lea.vmem %s11, %s754
        $region64: #{_fused_decoder_call.1} parent=15 // pred_fallthru
          _
        // Predicated region
        $region65: #{_fused_decoder_call.1} parent=15 // pred_check
          %p756 = pneg %p384
        $region66: #{_fused_decoder_call.1} parent=15 // pred_check_branch
          %758 = sbr.rel (%p756) target = $region68
        $region67: #{_fused_decoder_call.1} parent=15 // pred_region
          %p759 = scmp.lt.s32.totalorder %s48, 1
          %s760 = scalar_select %p759, %s48, 1
          %s761 = scalar_lea.vmem %s12, %s760
        $region68: #{_fused_decoder_call.1} parent=15 // pred_fallthru
          _
        // Predicated region
        $region69: #{_fused_decoder_call.1} parent=15 // pred_check
          %p762 = pneg %p410
        $region70: #{_fused_decoder_call.1} parent=15 // pred_check_branch
          %764 = sbr.rel (%p762) target = $region72
        $region71: #{_fused_decoder_call.1} parent=15 // pred_region
          %p765 = scmp.lt.s32.totalorder %s48, 1
          %s766 = scalar_select %p765, %s48, 1
          %s767 = smul.addr %s766, 4
          %s768 = smul.addr %s767, 4
          %s769 = scalar_lea.vmem %s13, %s768
        $region72: #{_fused_decoder_call.1} parent=15 // pred_fallthru
          _
        // Predicated region
        $region73: #{_fused_decoder_call.1} parent=15 // pred_check
          %p770 = pneg %p436
        $region74: #{_fused_decoder_call.1} parent=15 // pred_check_branch
          %772 = sbr.rel (%p770) target = $region76
        $region75: #{_fused_decoder_call.1} parent=15 // pred_region
          %p773 = scmp.lt.s32.totalorder %s48, 1
          %s774 = scalar_select %p773, %s48, 1
          %s775 = scalar_lea.vmem %s14, %s774
        $region76: #{_fused_decoder_call.1} parent=15 // pred_fallthru
          _
        // Predicated region
        $region77: #{_fused_decoder_call.1} parent=15 // pred_check
          %p776 = pneg %p462
        $region78: #{_fused_decoder_call.1} parent=15 // pred_check_branch
          %778 = sbr.rel (%p776) target = $region80
        $region79: #{_fused_decoder_call.1} parent=15 // pred_region
          %p779 = scmp.lt.s32.totalorder %s48, 1
          %s780 = scalar_select %p779, %s48, 1
          %s781 = smul.addr %s780, 16
          %s782 = smul.addr %s781, 4
          %s783 = scalar_lea.vmem %s15, %s782
        $region80: #{_fused_decoder_call.1} parent=15 // pred_fallthru
          _
        // Predicated region
        $region81: #{_fused_decoder_call.1} parent=15 // pred_check
          %p784 = pneg %p488
        $region82: #{_fused_decoder_call.1} parent=15 // pred_check_branch
          %786 = sbr.rel (%p784) target = $region84
        $region83: #{_fused_decoder_call.1} parent=15 // pred_region
          %p787 = scmp.lt.s32.totalorder %s48, 1
          %s788 = scalar_select %p787, %s48, 1
          %s789 = scalar_lea.vmem %s16, %s788
        $region84: #{_fused_decoder_call.1} parent=15 // pred_fallthru
          _
        // Predicated region
        $region85: #{_fused_decoder_call.1} parent=15 // pred_check
          %p790 = pneg %p514
        $region86: #{_fused_decoder_call.1} parent=15 // pred_check_branch
          %792 = sbr.rel (%p790) target = $region88
        $region87: #{_fused_decoder_call.1} parent=15 // pred_region
          %p793 = scmp.lt.s32.totalorder %s48, 1
          %s794 = scalar_select %p793, %s48, 1
          %s795 = scalar_lea.vmem %s17, %s794
        $region88: #{_fused_decoder_call.1} parent=15 // pred_fallthru
          _
        // Predicated region
        $region89: #{_fused_decoder_call.1} parent=15 // pred_check
          %p796 = pneg %p540
        $region90: #{_fused_decoder_call.1} parent=15 // pred_check_branch
          %798 = sbr.rel (%p796) target = $region92
        $region91: #{_fused_decoder_call.1} parent=15 // pred_region
          %p799 = scmp.lt.s32.totalorder %s48, 1
          %s800 = scalar_select %p799, %s48, 1
          %s801 = scalar_lea.vmem %s18, %s800
        $region92: #{_fused_decoder_call.1} parent=15 // pred_fallthru
          _
      $region16: #{_fused_decoder_call.1} parent=5 // pred_fallthru
        _
      %p802 = scmp.le.s32.totalorder 1, %s40
      %p803 = scmp.lt.s32.totalorder %s40, 5
      %p804 = pnand %p802, %p803
      %p805 = pneg %p804
      // Predicated region
      $region93: #{_fused_decoder_call.1} parent=5 // pred_check
        _
      $region94: #{_fused_decoder_call.1} parent=5 // pred_check_branch
        %807 = sbr.rel (%p804) target = $region96
      $region95: #{_fused_decoder_call.1} parent=5 // pred_region
        %s808 = ssub.s32 %s40, 1
        %s809 = sand.u32 %s65, 1
        %s810 = scalar_lea.sflag [#allocation4], %s809
        %s811 = sand.u32 %s65, 1
        %s812 = smul.addr %s811, 8
        %s813 = scalar_lea.vmem [#allocation3], %s812
        // Predicated region
        $region97: #{_fused_decoder_call.1} parent=95 // pred_check
          %p814 = pneg %p78
        $region98: #{_fused_decoder_call.1} parent=95 // pred_check_branch
          %816 = sbr.rel (%p814) target = $region100
        $region99: #{_fused_decoder_call.1} parent=95 // pred_region
          %817 = dma.done %s810, 128
        $region100: #{_fused_decoder_call.1} parent=95 // pred_fallthru
          _
        %s818 = sand.u32 %s91, 1
        %s819 = scalar_lea.sflag [#allocation7], %s818
        %s820 = sand.u32 %s91, 1
        %s821 = smul.addr %s820, 8
        %s822 = scalar_lea.vmem [#allocation6], %s821
        // Predicated region
        $region101: #{_fused_decoder_call.1} parent=95 // pred_check
          %p823 = pneg %p104
        $region102: #{_fused_decoder_call.1} parent=95 // pred_check_branch
          %825 = sbr.rel (%p823) target = $region104
        $region103: #{_fused_decoder_call.1} parent=95 // pred_region
          %826 = dma.done %s819, 128
        $region104: #{_fused_decoder_call.1} parent=95 // pred_fallthru
          _
        %s827 = sand.u32 %s65, 1
        %s828 = scalar_lea.sflag [#allocation4], %s827
        %s829 = sand.u32 %s65, 1
        %s830 = smul.addr %s829, 8
        %s831 = scalar_lea.vmem [#allocation3], %s830
        %p832 = pneg %p78
        %p833 = pneg %p75
        %s834 = sand.u32 %s91, 1
        %s835 = scalar_lea.sflag [#allocation7], %s834
        %s836 = sand.u32 %s91, 1
        %s837 = smul.addr %s836, 8
        %s838 = scalar_lea.vmem [#allocation6], %s837
        %p839 = pneg %p104
        %p840 = pneg %p101
        %p841 = scmp.lt.s32.totalorder %s49, 1
        %s842 = scalar_select %p841, %s49, 1
        %s843 = scalar_lea.vmem %s2, %s842
        %p844 = pneg %p130
        %p845 = pneg %p127
        %p846 = scmp.lt.s32.totalorder %s50, 1
        %s847 = scalar_select %p846, %s50, 1
        %s848 = smul.addr %s847, 4
        %s849 = smul.addr %s848, 4
        %s850 = scalar_lea.vmem %s3, %s849
        %p851 = pneg %p156
        %p852 = pneg %p153
        %p853 = scmp.lt.s32.totalorder %s50, 1
        %s854 = scalar_select %p853, %s50, 1
        %s855 = scalar_lea.vmem %s4, %s854
        %p856 = pneg %p182
        %p857 = pneg %p179
        %p858 = scmp.lt.s32.totalorder %s50, 1
        %s859 = scalar_select %p858, %s50, 1
        %s860 = smul.addr %s859, 4
        %s861 = smul.addr %s860, 4
        %s862 = scalar_lea.vmem %s5, %s861
        %p863 = pneg %p208
        %p864 = pneg %p205
        %p865 = scmp.lt.s32.totalorder %s50, 1
        %s866 = scalar_select %p865, %s50, 1
        %s867 = scalar_lea.vmem %s6, %s866
        %p868 = pneg %p234
        %p869 = pneg %p231
        %p870 = scmp.lt.s32.totalorder %s50, 1
        %s871 = scalar_select %p870, %s50, 1
        %s872 = smul.addr %s871, 4
        %s873 = smul.addr %s872, 4
        %s874 = scalar_lea.vmem %s7, %s873
        %p875 = pneg %p260
        %p876 = pneg %p257
        %p877 = scmp.lt.s32.totalorder %s50, 1
        %s878 = scalar_select %p877, %s50, 1
        %s879 = scalar_lea.vmem %s8, %s878
        %p880 = pneg %p286
        %p881 = pneg %p283
        %p882 = scmp.lt.s32.totalorder %s50, 1
        %s883 = scalar_select %p882, %s50, 1
        %s884 = smul.addr %s883, 4
        %s885 = smul.addr %s884, 4
        %s886 = scalar_lea.vmem %s9, %s885
        %p887 = pneg %p312
        %p888 = pneg %p309
        %p889 = scmp.lt.s32.totalorder %s50, 1
        %s890 = scalar_select %p889, %s50, 1
        %s891 = scalar_lea.vmem %s10, %s890
        %p892 = pneg %p338
        %p893 = pneg %p335
        %p894 = scmp.lt.s32.totalorder %s50, 1
        %s895 = scalar_select %p894, %s50, 1
        %s896 = scalar_lea.vmem %s11, %s895
        %p897 = pneg %p364
        %p898 = pneg %p361
        %p899 = scmp.lt.s32.totalorder %s50, 1
        %s900 = scalar_select %p899, %s50, 1
        %s901 = scalar_lea.vmem %s12, %s900
        %p902 = pneg %p390
        %p903 = pneg %p387
        %p904 = scmp.lt.s32.totalorder %s50, 1
        %s905 = scalar_select %p904, %s50, 1
        %s906 = smul.addr %s905, 4
        %s907 = smul.addr %s906, 4
        %s908 = scalar_lea.vmem %s13, %s907
        %p909 = pneg %p416
        %p910 = pneg %p413
        %p911 = scmp.lt.s32.totalorder %s50, 1
        %s912 = scalar_select %p911, %s50, 1
        %s913 = scalar_lea.vmem %s14, %s912
        %p914 = pneg %p442
        %p915 = pneg %p439
        %p916 = scmp.lt.s32.totalorder %s50, 1
        %s917 = scalar_select %p916, %s50, 1
        %s918 = smul.addr %s917, 16
        %s919 = smul.addr %s918, 4
        %s920 = scalar_lea.vmem %s15, %s919
        %p921 = pneg %p468
        %p922 = pneg %p465
        %p923 = scmp.lt.s32.totalorder %s50, 1
        %s924 = scalar_select %p923, %s50, 1
        %s925 = scalar_lea.vmem %s16, %s924
        %p926 = pneg %p494
        %p927 = pneg %p491
        %p928 = scmp.lt.s32.totalorder %s50, 1
        %s929 = scalar_select %p928, %s50, 1
        %s930 = scalar_lea.vmem %s17, %s929
        %p931 = pneg %p520
        %p932 = pneg %p517
        %p933 = scmp.lt.s32.totalorder %s50, 1
        %s934 = scalar_select %p933, %s50, 1
        %s935 = scalar_lea.vmem %s18, %s934
        %p936 = pneg %p546
        %p937 = pneg %p543
        %p938 = pneg %p574
        %p939 = pneg %p571
        %s940 = sand.u32 %s561, 1
        %s941 = scalar_lea.sflag [#allocation5], %s940
        %s942 = sand.u32 %s561, 1
        %s943 = smul.addr %s942, 8
        %s944 = scalar_lea.vmem [#allocation8], %s943
        %p945 = pneg %p602
        %p946 = pneg %p599
        %s947 = sand.u32 %s45, 1
        %s948 = scalar_lea.sflag [#allocation10], %s947
        %s949 = sand.u32 %s589, 1
        %s950 = smul.addr %s949, 8
        %s951 = scalar_lea.vmem [#allocation9], %s950
        %p952 = pneg %p630
        %p953 = pneg %p627
        %s954 = sand.u32 %s45, 1
        %s955 = scalar_lea.sflag [#allocation10], %s954
        %s956 = sand.u32 %s617, 1
        %s957 = scalar_lea.vmem [#allocation11], %s956
        %p958 = scmp.lt.s32.totalorder %s49, 1
        %s959 = scalar_select %p958, %s49, 1
        %s960 = scalar_lea.vmem %s2, %s959
        %p961 = scmp.lt.s32.totalorder %s50, 1
        %s962 = scalar_select %p961, %s50, 1
        %s963 = smul.addr %s962, 4
        %s964 = smul.addr %s963, 4
        %s965 = scalar_lea.vmem %s3, %s964
        %p966 = scmp.lt.s32.totalorder %s50, 1
        %s967 = scalar_select %p966, %s50, 1
        %s968 = scalar_lea.vmem %s4, %s967
        %p969 = scmp.lt.s32.totalorder %s50, 1
        %s970 = scalar_select %p969, %s50, 1
        %s971 = smul.addr %s970, 4
        %s972 = smul.addr %s971, 4
        %s973 = scalar_lea.vmem %s5, %s972
        %p974 = scmp.lt.s32.totalorder %s50, 1
        %s975 = scalar_select %p974, %s50, 1
        %s976 = scalar_lea.vmem %s6, %s975
        %p977 = scmp.lt.s32.totalorder %s50, 1
        %s978 = scalar_select %p977, %s50, 1
        %s979 = smul.addr %s978, 4
        %s980 = smul.addr %s979, 4
        %s981 = scalar_lea.vmem %s7, %s980
        %p982 = scmp.lt.s32.totalorder %s50, 1
        %s983 = scalar_select %p982, %s50, 1
        %s984 = scalar_lea.vmem %s8, %s983
        %p985 = scmp.lt.s32.totalorder %s50, 1
        %s986 = scalar_select %p985, %s50, 1
        %s987 = smul.addr %s986, 4
        %s988 = smul.addr %s987, 4
        %s989 = scalar_lea.vmem %s9, %s988
        %p990 = scmp.lt.s32.totalorder %s50, 1
        %s991 = scalar_select %p990, %s50, 1
        %s992 = scalar_lea.vmem %s10, %s991
        %p993 = scmp.lt.s32.totalorder %s50, 1
        %s994 = scalar_select %p993, %s50, 1
        %s995 = scalar_lea.vmem %s11, %s994
        %p996 = scmp.lt.s32.totalorder %s50, 1
        %s997 = scalar_select %p996, %s50, 1
        %s998 = scalar_lea.vmem %s12, %s997
        %p999 = scmp.lt.s32.totalorder %s50, 1
        %s1000 = scalar_select %p999, %s50, 1
        %s1001 = smul.addr %s1000, 4
        %s1002 = smul.addr %s1001, 4
        %s1003 = scalar_lea.vmem %s13, %s1002
        %p1004 = scmp.lt.s32.totalorder %s50, 1
        %s1005 = scalar_select %p1004, %s50, 1
        %s1006 = scalar_lea.vmem %s14, %s1005
        %p1007 = scmp.lt.s32.totalorder %s50, 1
        %s1008 = scalar_select %p1007, %s50, 1
        %s1009 = smul.addr %s1008, 16
        %s1010 = smul.addr %s1009, 4
        %s1011 = scalar_lea.vmem %s15, %s1010
        %p1012 = scmp.lt.s32.totalorder %s50, 1
        %s1013 = scalar_select %p1012, %s50, 1
        %s1014 = scalar_lea.vmem %s16, %s1013
        %p1015 = scmp.lt.s32.totalorder %s50, 1
        %s1016 = scalar_select %p1015, %s50, 1
        %s1017 = scalar_lea.vmem %s17, %s1016
        %p1018 = scmp.lt.s32.totalorder %s50, 1
        %s1019 = scalar_select %p1018, %s50, 1
        %s1020 = scalar_lea.vmem %s18, %s1019
        %p1022 = scmp.eq.s32.totalorder %s50, 0
        // Predicated region
        $region105: #{_fused_decoder_call.1} parent=95 // pred_check
          %p1023 = pneg %p1022
        $region106: #{_fused_decoder_call.1} parent=95 // pred_check_branch
          %1025 = sbr.rel (%p1023) target = $region108
        $region107: #{_fused_decoder_call.1} parent=95 // pred_region
          %v1026 = vld [vmem:[%s813] sm:$0xff]
          %vm1027 = vcmask 261120
          %1028 = vst.msk [vmem:[#allocation2] sm:$0xff] %vm1027, %v1026
        $region108: #{_fused_decoder_call.1} parent=95 // pred_fallthru
          _
        %v1029 = vld [vmem:[#allocation2] sm:$0xff]
        %v1030 = vld [vmem:[%s822] sm:$0xf]
        %v1031 = vld [vmem:[%s822 + $0x4] sm:$0xf]
        %v1032 = vld [vmem:[%s960] sm:$0x1]
        %v1033 = vpack.c.bf16 %v1029, %v1029
        %v1034 = vld [vmem:[%s965] sm:$0xf]
        %v1035 = vld [vmem:[%s965 + $0x4] sm:$0xf]
        %v1036 = vld [vmem:[%s965 + $0x8] sm:$0xf]
        %v1037 = vld [vmem:[%s965 + $0xc] sm:$0xf]
        %v1038 = vld [vmem:[%s968] sm:$0x1]
        %v1040 = vlaneseq
        %v1041 = vshrl.u32 %v1040, 7
        %v1042 = vsub.s32 0, %v1041
        %v1043 = vrot.slane %v1038, %v1042
        %v1049 = vunpack.c.l.b16 %v1034
        %v1050 = vunpack.c.l.b16 %v1035
        %v1051 = vunpack.c.l.b16 %v1036
        %v1052 = vunpack.c.l.b16 %v1037
        %v1053 = vpack.c.b16 %v1050, %v1049
        %v1054 = vpack.c.b16 %v1052, %v1051
        %vm1057 = vcmask 261120
        %v1059 = vsel %vm1057, %v1033, 0
        %1061 = vmatprep.subr.bf16.mxu0 0
        %1062 = vmatpush1.bf16.msra.mxu0 %v1053
        %1063 = vmatprep.subr.bf16.mxu0 0
        %1064 = vmatpush1.bf16.msra.mxu0 %v1054
        %1065 = vmatprep.subr.bf16.mxu0 0
        %1066 = vmatpush1.bf16.msra.mxu0 0
        %1067 = vmatprep.subr.bf16.mxu0 0
        %1068 = vmatpush1.bf16.msra.mxu0 0
        %1069 = vmatprep.subr.bf16.mxu0 0
        %1070 = vmatpush1.bf16.msra.mxu0 0
        %1071 = vmatprep.subr.bf16.mxu0 0
        %1072 = vmatpush1.bf16.msra.mxu0 0
        %1073 = vmatprep.subr.bf16.mxu0 0
        %1074 = vmatpush1.bf16.msra.mxu0 0
        %1075 = vmatprep.subr.bf16.mxu0 0
        %1076 = vmatpush1.bf16.msra.mxu0 0
        %1077 = vmatprep.subr.bf16.mxu0 0
        %1078 = vmatpush1.bf16.msra.mxu0 0
        %1079 = vmatprep.subr.bf16.mxu0 0
        %1080 = vmatpush1.bf16.msra.mxu0 0
        %1081 = vmatprep.subr.bf16.mxu0 0
        %1082 = vmatpush1.bf16.msra.mxu0 0
        %1083 = vmatprep.subr.bf16.mxu0 0
        %1084 = vmatpush1.bf16.msra.mxu0 0
        %1085 = vmatprep.subr.bf16.mxu0 0
        %1086 = vmatpush1.bf16.msra.mxu0 0
        %1087 = vmatprep.subr.bf16.mxu0 0
        %1088 = vmatpush1.bf16.msra.mxu0 0
        %1089 = vmatprep.subr.bf16.mxu0 0
        %1090 = vmatpush1.bf16.msra.mxu0 0
        %1091 = vmatprep.subr.bf16.mxu0 0
        %1092 = vmatpush1.bf16.msra.mxu0 0
        %1093 = vmatprep.mubr.bf16.mxu0 0
        %1094 = vmatmul.mubr.bf16.gmra.mrb[0].mxu0 %v1059
        %v1095 = vpop.f32.mrb[0].mxu0
        %v1096 = vadd.f32 %v1043, %v1095
        %v1097 = vpop.f32.mrb[0].mxu0
        %v1098 = vpop.f32.mrb[0].mxu0
        %v1099 = vpop.f32.mrb[0].mxu0
        %1100 = vdwg.mxu0
        %v1101 = vld [vmem:[%s973] sm:$0xf]
        %v1102 = vld [vmem:[%s973 + $0x4] sm:$0xf]
        %v1103 = vld [vmem:[%s973 + $0x8] sm:$0xf]
        %v1104 = vld [vmem:[%s973 + $0xc] sm:$0xf]
        %v1105 = vld [vmem:[%s976] sm:$0x1]
        %v1107 = vlaneseq
        %v1108 = vshrl.u32 %v1107, 7
        %v1109 = vsub.s32 0, %v1108
        %v1110 = vrot.slane %v1105, %v1109
        %v1114 = vunpack.c.l.b16 %v1030
        %v1115 = vunpack.c.l.b16 %v1031
        %v1116 = vpack.c.b16 %v1115, %v1114
        %v1121 = vunpack.c.l.b16 %v1101
        %v1122 = vunpack.c.l.b16 %v1102
        %v1123 = vunpack.c.l.b16 %v1103
        %v1124 = vunpack.c.l.b16 %v1104
        %v1125 = vpack.c.b16 %v1122, %v1121
        %v1126 = vpack.c.b16 %v1124, %v1123
        %v1130 = vsel %vm1057, %v1116, 0
        %1132 = vmatprep.subr.bf16.mxu0 0
        %1133 = vmatpush1.bf16.msra.mxu0 %v1125
        %1134 = vmatprep.subr.bf16.mxu0 0
        %1135 = vmatpush1.bf16.msra.mxu0 %v1126
        %1136 = vmatprep.subr.bf16.mxu0 0
        %1137 = vmatpush1.bf16.msra.mxu0 0
        %1138 = vmatprep.subr.bf16.mxu0 0
        %1139 = vmatpush1.bf16.msra.mxu0 0
        %1140 = vmatprep.subr.bf16.mxu0 0
        %1141 = vmatpush1.bf16.msra.mxu0 0
        %1142 = vmatprep.subr.bf16.mxu0 0
        %1143 = vmatpush1.bf16.msra.mxu0 0
        %1144 = vmatprep.subr.bf16.mxu0 0
        %1145 = vmatpush1.bf16.msra.mxu0 0
        %1146 = vmatprep.subr.bf16.mxu0 0
        %1147 = vmatpush1.bf16.msra.mxu0 0
        %1148 = vmatprep.subr.bf16.mxu0 0
        %1149 = vmatpush1.bf16.msra.mxu0 0
        %1150 = vmatprep.subr.bf16.mxu0 0
        %1151 = vmatpush1.bf16.msra.mxu0 0
        %1152 = vmatprep.subr.bf16.mxu0 0
        %1153 = vmatpush1.bf16.msra.mxu0 0
        %1154 = vmatprep.subr.bf16.mxu0 0
        %1155 = vmatpush1.bf16.msra.mxu0 0
        %1156 = vmatprep.subr.bf16.mxu0 0
        %1157 = vmatpush1.bf16.msra.mxu0 0
        %1158 = vmatprep.subr.bf16.mxu0 0
        %1159 = vmatpush1.bf16.msra.mxu0 0
        %1160 = vmatprep.subr.bf16.mxu0 0
        %1161 = vmatpush1.bf16.msra.mxu0 0
        %1162 = vmatprep.subr.bf16.mxu0 0
        %1163 = vmatpush1.bf16.msra.mxu0 0
        %1164 = vmatprep.mubr.bf16.mxu0 0
        %1165 = vmatmul.mubr.bf16.gmra.mrb[0].mxu0 %v1130
        %v1166 = vpop.f32.mrb[0].mxu0
        %v1167 = vadd.f32 %v1110, %v1166
        %v1168 = vpop.f32.mrb[0].mxu0
        %v1169 = vpop.f32.mrb[0].mxu0
        %v1170 = vadd.f32 %v1110, %v1169
        %v1171 = vpop.f32.mrb[0].mxu0
        %1172 = vdwg.mxu0
        %v1173 = vld [vmem:[%s981] sm:$0xf]
        %v1174 = vld [vmem:[%s981 + $0x4] sm:$0xf]
        %v1175 = vld [vmem:[%s981 + $0x8] sm:$0xf]
        %v1176 = vld [vmem:[%s981 + $0xc] sm:$0xf]
        %v1177 = vld [vmem:[%s984] sm:$0x1]
        %v1179 = vlaneseq
        %v1180 = vshrl.u32 %v1179, 7
        %v1181 = vsub.s32 0, %v1180
        %v1182 = vrot.slane %v1177, %v1181
        %v1188 = vunpack.c.l.b16 %v1173
        %v1189 = vunpack.c.l.b16 %v1174
        %v1190 = vunpack.c.l.b16 %v1175
        %v1191 = vunpack.c.l.b16 %v1176
        %v1192 = vpack.c.b16 %v1189, %v1188
        %v1193 = vpack.c.b16 %v1191, %v1190
        %1196 = vmatprep.subr.bf16.mxu0 0
        %1197 = vmatpush1.bf16.msra.mxu0 %v1192
        %1198 = vmatprep.subr.bf16.mxu0 0
        %1199 = vmatpush1.bf16.msra.mxu0 %v1193
        %1200 = vmatprep.subr.bf16.mxu0 0
        %1201 = vmatpush1.bf16.msra.mxu0 0
        %1202 = vmatprep.subr.bf16.mxu0 0
        %1203 = vmatpush1.bf16.msra.mxu0 0
        %1204 = vmatprep.subr.bf16.mxu0 0
        %1205 = vmatpush1.bf16.msra.mxu0 0
        %1206 = vmatprep.subr.bf16.mxu0 0
        %1207 = vmatpush1.bf16.msra.mxu0 0
        %1208 = vmatprep.subr.bf16.mxu0 0
        %1209 = vmatpush1.bf16.msra.mxu0 0
        %1210 = vmatprep.subr.bf16.mxu0 0
        %1211 = vmatpush1.bf16.msra.mxu0 0
        %1212 = vmatprep.subr.bf16.mxu0 0
        %1213 = vmatpush1.bf16.msra.mxu0 0
        %1214 = vmatprep.subr.bf16.mxu0 0
        %1215 = vmatpush1.bf16.msra.mxu0 0
        %1216 = vmatprep.subr.bf16.mxu0 0
        %1217 = vmatpush1.bf16.msra.mxu0 0
        %1218 = vmatprep.subr.bf16.mxu0 0
        %1219 = vmatpush1.bf16.msra.mxu0 0
        %1220 = vmatprep.subr.bf16.mxu0 0
        %1221 = vmatpush1.bf16.msra.mxu0 0
        %1222 = vmatprep.subr.bf16.mxu0 0
        %1223 = vmatpush1.bf16.msra.mxu0 0
        %1224 = vmatprep.subr.bf16.mxu0 0
        %1225 = vmatpush1.bf16.msra.mxu0 0
        %1226 = vmatprep.subr.bf16.mxu0 0
        %1227 = vmatpush1.bf16.msra.mxu0 0
        %1228 = vmatprep.mubr.bf16.mxu0 0
        %1229 = vmatmul.mubr.bf16.gmra.mrb[0].mxu0 %v1130
        %v1230 = vpop.f32.mrb[0].mxu0
        %v1231 = vadd.f32 %v1182, %v1230
        %v1232 = vpop.f32.mrb[0].mxu0
        %v1233 = vpop.f32.mrb[0].mxu0
        %v1234 = vadd.f32 %v1182, %v1233
        %v1235 = vpop.f32.mrb[0].mxu0
        %1236 = vdwg.mxu0
        %v1237 = vpack.c.bf16 %v1096, %v1096
        %v1238 = vpack.c.bf16 %v1170, %v1167
        %v1239 = vpack.c.bf16 %v1234, %v1231
        %v1241 = vsel %vm1057, %v1032, 0
        %v1244 = vsel %vm1057, %v1238, 0
        %1246 = vmatprep.subr.bf16.mxu0 0
        %1247 = vmatpush1.bf16.xpose.msra.mxu0 %v1244
        %1248 = vmatprep.subr.bf16.mxu0 0
        %1249 = vmatpush1.bf16.xpose.msra.mxu0 0
        %1250 = vmatprep.subr.bf16.mxu0 0
        %1251 = vmatpush1.bf16.xpose.msra.mxu0 0
        %1252 = vmatprep.subr.bf16.mxu0 0
        %1253 = vmatpush1.bf16.xpose.msra.mxu0 0
        %1254 = vmatprep.subr.bf16.mxu0 0
        %1255 = vmatpush1.bf16.xpose.msra.mxu0 0
        %1256 = vmatprep.subr.bf16.mxu0 0
        %1257 = vmatpush1.bf16.xpose.msra.mxu0 0
        %1258 = vmatprep.subr.bf16.mxu0 0
        %1259 = vmatpush1.bf16.xpose.msra.mxu0 0
        %1260 = vmatprep.subr.bf16.mxu0 0
        %1261 = vmatpush1.bf16.xpose.msra.mxu0 0
        %1262 = vmatprep.subr.bf16.mxu0 0
        %1263 = vmatpush1.bf16.xpose.msra.mxu0 0
        %1264 = vmatprep.subr.bf16.mxu0 0
        %1265 = vmatpush1.bf16.xpose.msra.mxu0 0
        %1266 = vmatprep.subr.bf16.mxu0 0
        %1267 = vmatpush1.bf16.xpose.msra.mxu0 0
        %1268 = vmatprep.subr.bf16.mxu0 0
        %1269 = vmatpush1.bf16.xpose.msra.mxu0 0
        %1270 = vmatprep.subr.bf16.mxu0 0
        %1271 = vmatpush1.bf16.xpose.msra.mxu0 0
        %1272 = vmatprep.subr.bf16.mxu0 0
        %1273 = vmatpush1.bf16.xpose.msra.mxu0 0
        %1274 = vmatprep.subr.bf16.mxu0 0
        %1275 = vmatpush1.bf16.xpose.msra.mxu0 0
        %1276 = vmatprep.subr.bf16.mxu0 0
        %1277 = vmatpush1.bf16.xpose.msra.mxu0 0
        %1278 = vmatprep.mubr.bf16.mxu0 0
        %1279 = vmatmul.mubr.bf16.gmra.mrb[0].mxu0 %v1241
        %v1280 = vpop.f32.mrb[0].mxu0
        %v1281 = vadd.f32 0.0, %v1280
        %v1282 = vpop.f32.mrb[0].mxu0
        %v1283 = vpop.f32.mrb[0].mxu0
        %v1284 = vpop.f32.mrb[0].mxu0
        %1285 = vdwg.mxu0
        %v1286 = vxor.u32 %v1281, 2147483648
        %v1287 = vmul.f32 %v1286, 1.442695
        %v1288 = vpow.pop %v1287
        %v1289 = vadd.f32 %v1288, 1.0
        %v1290 = vrcp.pop %v1289
        %v1291 = vmul.f32 1.0, %v1290
        %vm1292 = vcmask 64512
        %v1294 = vsel %vm1292, %v1237, 0
        %v1296 = vsel %vm1292, %v1238, 0
        %1298 = vmatprep.subr.bf16.mxu0 0
        %1299 = vmatpush1.bf16.xpose.msra.mxu0 %v1296
        %1300 = vmatprep.subr.bf16.mxu0 0
        %1301 = vmatpush1.bf16.xpose.msra.mxu0 0
        %1302 = vmatprep.subr.bf16.mxu0 0
        %1303 = vmatpush1.bf16.xpose.msra.mxu0 0
        %1304 = vmatprep.subr.bf16.mxu0 0
        %1305 = vmatpush1.bf16.xpose.msra.mxu0 0
        %1306 = vmatprep.subr.bf16.mxu0 0
        %1307 = vmatpush1.bf16.xpose.msra.mxu0 0
        %1308 = vmatprep.subr.bf16.mxu0 0
        %1309 = vmatpush1.bf16.xpose.msra.mxu0 0
        %1310 = vmatprep.subr.bf16.mxu0 0
        %1311 = vmatpush1.bf16.xpose.msra.mxu0 0
        %1312 = vmatprep.subr.bf16.mxu0 0
        %1313 = vmatpush1.bf16.xpose.msra.mxu0 0
        %1314 = vmatprep.subr.bf16.mxu0 0
        %1315 = vmatpush1.bf16.xpose.msra.mxu0 0
        %1316 = vmatprep.subr.bf16.mxu0 0
        %1317 = vmatpush1.bf16.xpose.msra.mxu0 0
        %1318 = vmatprep.subr.bf16.mxu0 0
        %1319 = vmatpush1.bf16.xpose.msra.mxu0 0
        %1320 = vmatprep.subr.bf16.mxu0 0
        %1321 = vmatpush1.bf16.xpose.msra.mxu0 0
        %1322 = vmatprep.subr.bf16.mxu0 0
        %1323 = vmatpush1.bf16.xpose.msra.mxu0 0
        %1324 = vmatprep.subr.bf16.mxu0 0
        %1325 = vmatpush1.bf16.xpose.msra.mxu0 0
        %1326 = vmatprep.subr.bf16.mxu0 0
        %1327 = vmatpush1.bf16.xpose.msra.mxu0 0
        %1328 = vmatprep.subr.bf16.mxu0 0
        %1329 = vmatpush1.bf16.xpose.msra.mxu0 0
        %1330 = vmatprep.mubr.bf16.mxu0 0
        %1331 = vmatmul.mubr.bf16.gmra.mrb[0].mxu0 %v1294
        %v1332 = vpop.f32.mrb[0].mxu0
        %v1333 = vadd.f32 0.0, %v1332
        %v1334 = vpop.f32.mrb[0].mxu0
        %v1335 = vpop.f32.mrb[0].mxu0
        %v1336 = vpop.f32.mrb[0].mxu0
        %1337 = vdwg.mxu0
        %1339 = vrot.lane.b32.xlu0 %v1237, 120
        %v1340 = vpop.permute.xlu0 %1339
        %1342 = vrot.lane.b32.xlu0 %v1238, 120
        %v1343 = vpop.permute.xlu0 %1342
        %v1345 = vsel %vm1292, %v1340, 0
        %v1348 = vsel %vm1292, %v1343, 0
        %1350 = vmatprep.subr.bf16.mxu0 0
        %1351 = vmatpush1.bf16.xpose.msra.mxu0 %v1348
        %1352 = vmatprep.subr.bf16.mxu0 0
        %1353 = vmatpush1.bf16.xpose.msra.mxu0 0
        %1354 = vmatprep.subr.bf16.mxu0 0
        %1355 = vmatpush1.bf16.xpose.msra.mxu0 0
        %1356 = vmatprep.subr.bf16.mxu0 0
        %1357 = vmatpush1.bf16.xpose.msra.mxu0 0
        %1358 = vmatprep.subr.bf16.mxu0 0
        %1359 = vmatpush1.bf16.xpose.msra.mxu0 0
        %1360 = vmatprep.subr.bf16.mxu0 0
        %1361 = vmatpush1.bf16.xpose.msra.mxu0 0
        %1362 = vmatprep.subr.bf16.mxu0 0
        %1363 = vmatpush1.bf16.xpose.msra.mxu0 0
        %1364 = vmatprep.subr.bf16.mxu0 0
        %1365 = vmatpush1.bf16.xpose.msra.mxu0 0
        %1366 = vmatprep.subr.bf16.mxu0 0
        %1367 = vmatpush1.bf16.xpose.msra.mxu0 0
        %1368 = vmatprep.subr.bf16.mxu0 0
        %1369 = vmatpush1.bf16.xpose.msra.mxu0 0
        %1370 = vmatprep.subr.bf16.mxu0 0
        %1371 = vmatpush1.bf16.xpose.msra.mxu0 0
        %1372 = vmatprep.subr.bf16.mxu0 0
        %1373 = vmatpush1.bf16.xpose.msra.mxu0 0
        %1374 = vmatprep.subr.bf16.mxu0 0
        %1375 = vmatpush1.bf16.xpose.msra.mxu0 0
        %1376 = vmatprep.subr.bf16.mxu0 0
        %1377 = vmatpush1.bf16.xpose.msra.mxu0 0
        %1378 = vmatprep.subr.bf16.mxu0 0
        %1379 = vmatpush1.bf16.xpose.msra.mxu0 0
        %1380 = vmatprep.subr.bf16.mxu0 0
        %1381 = vmatpush1.bf16.xpose.msra.mxu0 0
        %1382 = vmatprep.mubr.bf16.mxu0 0
        %1383 = vmatmul.mubr.bf16.gmra.mrb[0].mxu0 %v1345
        %v1384 = vpop.f32.mrb[0].mxu0
        %v1385 = vadd.f32 0.0, %v1384
        %v1386 = vpop.f32.mrb[0].mxu0
        %v1387 = vpop.f32.mrb[0].mxu0
        %v1388 = vpop.f32.mrb[0].mxu0
        %1389 = vdwg.mxu0
        %1390 = vrot.lane.b32.xlu0 %v1237, 112
        %v1391 = vpop.permute.xlu0 %1390
        %1392 = vrot.lane.b32.xlu0 %v1238, 112
        %v1393 = vpop.permute.xlu0 %1392
        %v1395 = vsel %vm1292, %v1391, 0
        %v1398 = vsel %vm1292, %v1393, 0
        %1400 = vmatprep.subr.bf16.mxu0 0
        %1401 = vmatpush1.bf16.xpose.msra.mxu0 %v1398
        %1402 = vmatprep.subr.bf16.mxu0 0
        %1403 = vmatpush1.bf16.xpose.msra.mxu0 0
        %1404 = vmatprep.subr.bf16.mxu0 0
        %1405 = vmatpush1.bf16.xpose.msra.mxu0 0
        %1406 = vmatprep.subr.bf16.mxu0 0
        %1407 = vmatpush1.bf16.xpose.msra.mxu0 0
        %1408 = vmatprep.subr.bf16.mxu0 0
        %1409 = vmatpush1.bf16.xpose.msra.mxu0 0
        %1410 = vmatprep.subr.bf16.mxu0 0
        %1411 = vmatpush1.bf16.xpose.msra.mxu0 0
        %1412 = vmatprep.subr.bf16.mxu0 0
        %1413 = vmatpush1.bf16.xpose.msra.mxu0 0
        %1414 = vmatprep.subr.bf16.mxu0 0
        %1415 = vmatpush1.bf16.xpose.msra.mxu0 0
        %1416 = vmatprep.subr.bf16.mxu0 0
        %1417 = vmatpush1.bf16.xpose.msra.mxu0 0
        %1418 = vmatprep.subr.bf16.mxu0 0
        %1419 = vmatpush1.bf16.xpose.msra.mxu0 0
        %1420 = vmatprep.subr.bf16.mxu0 0
        %1421 = vmatpush1.bf16.xpose.msra.mxu0 0
        %1422 = vmatprep.subr.bf16.mxu0 0
        %1423 = vmatpush1.bf16.xpose.msra.mxu0 0
        %1424 = vmatprep.subr.bf16.mxu0 0
        %1425 = vmatpush1.bf16.xpose.msra.mxu0 0
        %1426 = vmatprep.subr.bf16.mxu0 0
        %1427 = vmatpush1.bf16.xpose.msra.mxu0 0
        %1428 = vmatprep.subr.bf16.mxu0 0
        %1429 = vmatpush1.bf16.xpose.msra.mxu0 0
        %1430 = vmatprep.subr.bf16.mxu0 0
        %1431 = vmatpush1.bf16.xpose.msra.mxu0 0
        %1432 = vmatprep.mubr.bf16.mxu0 0
        %1433 = vmatmul.mubr.bf16.gmra.mrb[0].mxu0 %v1395
        %v1434 = vpop.f32.mrb[0].mxu0
        %v1435 = vadd.f32 0.0, %v1434
        %v1436 = vpop.f32.mrb[0].mxu0
        %v1437 = vpop.f32.mrb[0].mxu0
        %v1438 = vpop.f32.mrb[0].mxu0
        %1439 = vdwg.mxu0
        %1440 = vrot.lane.b32.xlu0 %v1237, 104
        %v1441 = vpop.permute.xlu0 %1440
        %1442 = vrot.lane.b32.xlu0 %v1238, 104
        %v1443 = vpop.permute.xlu0 %1442
        %v1445 = vsel %vm1292, %v1441, 0
        %v1448 = vsel %vm1292, %v1443, 0
        %1450 = vmatprep.subr.bf16.mxu0 0
        %1451 = vmatpush1.bf16.xpose.msra.mxu0 %v1448
        %1452 = vmatprep.subr.bf16.mxu0 0
        %1453 = vmatpush1.bf16.xpose.msra.mxu0 0
        %1454 = vmatprep.subr.bf16.mxu0 0
        %1455 = vmatpush1.bf16.xpose.msra.mxu0 0
        %1456 = vmatprep.subr.bf16.mxu0 0
        %1457 = vmatpush1.bf16.xpose.msra.mxu0 0
        %1458 = vmatprep.subr.bf16.mxu0 0
        %1459 = vmatpush1.bf16.xpose.msra.mxu0 0
        %1460 = vmatprep.subr.bf16.mxu0 0
        %1461 = vmatpush1.bf16.xpose.msra.mxu0 0
        %1462 = vmatprep.subr.bf16.mxu0 0
        %1463 = vmatpush1.bf16.xpose.msra.mxu0 0
        %1464 = vmatprep.subr.bf16.mxu0 0
        %1465 = vmatpush1.bf16.xpose.msra.mxu0 0
        %1466 = vmatprep.subr.bf16.mxu0 0
        %1467 = vmatpush1.bf16.xpose.msra.mxu0 0
        %1468 = vmatprep.subr.bf16.mxu0 0
        %1469 = vmatpush1.bf16.xpose.msra.mxu0 0
        %1470 = vmatprep.subr.bf16.mxu0 0
        %1471 = vmatpush1.bf16.xpose.msra.mxu0 0
        %1472 = vmatprep.subr.bf16.mxu0 0
        %1473 = vmatpush1.bf16.xpose.msra.mxu0 0
        %1474 = vmatprep.subr.bf16.mxu0 0
        %1475 = vmatpush1.bf16.xpose.msra.mxu0 0
        %1476 = vmatprep.subr.bf16.mxu0 0
        %1477 = vmatpush1.bf16.xpose.msra.mxu0 0
        %1478 = vmatprep.subr.bf16.mxu0 0
        %1479 = vmatpush1.bf16.xpose.msra.mxu0 0
        %1480 = vmatprep.subr.bf16.mxu0 0
        %1481 = vmatpush1.bf16.xpose.msra.mxu0 0
        %1482 = vmatprep.mubr.bf16.mxu0 0
        %1483 = vmatmul.mubr.bf16.gmra.mrb[0].mxu0 %v1445
        %v1484 = vpop.f32.mrb[0].mxu0
        %v1485 = vadd.f32 0.0, %v1484
        %v1486 = vpop.f32.mrb[0].mxu0
        %v1487 = vpop.f32.mrb[0].mxu0
        %v1488 = vpop.f32.mrb[0].mxu0
        %1489 = vdwg.mxu0
        %vm1490 = vcmask 130048
        %v1491 = vsel %vm1490, %v1333, 0.0
        %v1492 = vsel %vm1490, %v1385, 0.0
        %v1493 = vadd.f32 %v1491, %v1492
        %v1494 = vsel %vm1490, %v1435, 0.0
        %v1495 = vadd.f32 %v1493, %v1494
        %v1496 = vsel %vm1490, %v1485, 0.0
        %v1497 = vadd.f32 %v1495, %v1496
        %v1498 = vmul.f32 %v1497, 0.25
        %v1499 = vsel %vm1490, %v1333, -inf
        %1500 = vmax.xlane.f32.xlu0 %v1499
        %v1501 = vpop.xlane.xlu0 %1500
        %v1502 = vsel %vm1490, %v1385, -inf
        %1503 = vmax.xlane.f32.xlu0 %v1502
        %v1504 = vpop.xlane.xlu0 %1503
        %v1505 = vsel %vm1490, %v1435, -inf
        %1506 = vmax.xlane.f32.xlu0 %v1505
        %v1507 = vpop.xlane.xlu0 %1506
        %v1508 = vsel %vm1490, %v1485, -inf
        %1509 = vmax.xlane.f32.xlu0 %v1508
        %v1510 = vpop.xlane.xlu0 %1509
        %v1511 = vsub.f32 %v1333, %v1501
        %v1512 = vsub.f32 %v1385, %v1504
        %v1513 = vsub.f32 %v1435, %v1507
        %v1514 = vsub.f32 %v1485, %v1510
        %v1515 = vmul.f32 %v1511, 1.442695
        %v1516 = vpow.pop %v1515
        %v1517 = vmul.f32 %v1512, 1.442695
        %v1518 = vpow.pop %v1517
        %v1519 = vmul.f32 %v1513, 1.442695
        %v1520 = vpow.pop %v1519
        %v1521 = vmul.f32 %v1514, 1.442695
        %v1522 = vpow.pop %v1521
        %v1523 = vsel %vm1490, %v1516, 0.0
        %1524 = vadd.xlane.f32.xlu0 %v1523
        %v1525 = vpop.xlane.xlu0 %1524
        %v1526 = vsel %vm1490, %v1518, 0.0
        %1527 = vadd.xlane.f32.xlu0 %v1526
        %v1528 = vpop.xlane.xlu0 %1527
        %v1529 = vsel %vm1490, %v1520, 0.0
        %1530 = vadd.xlane.f32.xlu0 %v1529
        %v1531 = vpop.xlane.xlu0 %1530
        %v1532 = vsel %vm1490, %v1522, 0.0
        %1533 = vadd.xlane.f32.xlu0 %v1532
        %v1534 = vpop.xlane.xlu0 %1533
        %v1535 = vrcp.pop %v1525
        %v1536 = vrcp.pop %v1528
        %v1537 = vrcp.pop %v1531
        %v1538 = vrcp.pop %v1534
        %v1539 = vmul.f32 %v1516, %v1535
        %v1540 = vmul.f32 %v1518, %v1536
        %v1541 = vmul.f32 %v1520, %v1537
        %v1542 = vmul.f32 %v1522, %v1538
        %v1543 = vlaneseq
        %v1544 = vshrl.u32 %v1543, 7
        %v1545 = vsub.s32 0, %v1544
        %v1546 = vrot.slane %v1291, %v1545
        %v1547 = vmul.f32 %v1539, %v1546
        %v1548 = vmul.f32 %v1540, %v1546
        %v1549 = vmul.f32 %v1541, %v1546
        %v1550 = vmul.f32 %v1542, %v1546
        %v1551 = vpack.c.bf16 %v1547, %v1547
        %v1552 = vpack.c.bf16 %v1548, %v1548
        %v1553 = vpack.c.bf16 %v1549, %v1549
        %v1554 = vpack.c.bf16 %v1550, %v1550
        %v1556 = vsel %vm1490, %v1551, 0
        %1558 = vmatprep.subr.bf16.mxu0 0
        %1559 = vmatpush1.bf16.msra.mxu0 %v1239
        %1560 = vmatprep.subr.bf16.mxu0 0
        %1561 = vmatpush1.bf16.msra.mxu0 0
        %1562 = vmatprep.subr.bf16.mxu0 0
        %1563 = vmatpush1.bf16.msra.mxu0 0
        %1564 = vmatprep.subr.bf16.mxu0 0
        %1565 = vmatpush1.bf16.msra.mxu0 0
        %1566 = vmatprep.subr.bf16.mxu0 0
        %1567 = vmatpush1.bf16.msra.mxu0 0
        %1568 = vmatprep.subr.bf16.mxu0 0
        %1569 = vmatpush1.bf16.msra.mxu0 0
        %1570 = vmatprep.subr.bf16.mxu0 0
        %1571 = vmatpush1.bf16.msra.mxu0 0
        %1572 = vmatprep.subr.bf16.mxu0 0
        %1573 = vmatpush1.bf16.msra.mxu0 0
        %1574 = vmatprep.subr.bf16.mxu0 0
        %1575 = vmatpush1.bf16.msra.mxu0 0
        %1576 = vmatprep.subr.bf16.mxu0 0
        %1577 = vmatpush1.bf16.msra.mxu0 0
        %1578 = vmatprep.subr.bf16.mxu0 0
        %1579 = vmatpush1.bf16.msra.mxu0 0
        %1580 = vmatprep.subr.bf16.mxu0 0
        %1581 = vmatpush1.bf16.msra.mxu0 0
        %1582 = vmatprep.subr.bf16.mxu0 0
        %1583 = vmatpush1.bf16.msra.mxu0 0
        %1584 = vmatprep.subr.bf16.mxu0 0
        %1585 = vmatpush1.bf16.msra.mxu0 0
        %1586 = vmatprep.subr.bf16.mxu0 0
        %1587 = vmatpush1.bf16.msra.mxu0 0
        %1588 = vmatprep.subr.bf16.mxu0 0
        %1589 = vmatpush1.bf16.msra.mxu0 0
        %1590 = vmatprep.mubr.bf16.mxu0 0
        %1591 = vmatmul.mubr.bf16.gmra.mrb[0].mxu0 %v1556
        %v1592 = vpop.f32.mrb[0].mxu0
        %v1593 = vadd.f32 0.0, %v1592
        %v1594 = vpop.f32.mrb[0].mxu0
        %v1595 = vpop.f32.mrb[0].mxu0
        %v1596 = vpop.f32.mrb[0].mxu0
        %1597 = vdwg.mxu0
        %v1598 = vpack.c.bf16 %v1593, %v1593
        %v1599 = vld [vmem:[%s989] sm:$0xf]
        %1601 = vrot.lane.b32.xlu0 %v1239, 120
        %v1602 = vpop.permute.xlu0 %1601
        %v1605 = vsel %vm1490, %v1552, 0
        %1607 = vmatprep.subr.bf16.mxu0 0
        %1608 = vmatpush1.bf16.msra.mxu0 %v1602
        %1609 = vmatprep.subr.bf16.mxu0 0
        %1610 = vmatpush1.bf16.msra.mxu0 0
        %1611 = vmatprep.subr.bf16.mxu0 0
        %1612 = vmatpush1.bf16.msra.mxu0 0
        %1613 = vmatprep.subr.bf16.mxu0 0
        %1614 = vmatpush1.bf16.msra.mxu0 0
        %1615 = vmatprep.subr.bf16.mxu0 0
        %1616 = vmatpush1.bf16.msra.mxu0 0
        %1617 = vmatprep.subr.bf16.mxu0 0
        %1618 = vmatpush1.bf16.msra.mxu0 0
        %1619 = vmatprep.subr.bf16.mxu0 0
        %1620 = vmatpush1.bf16.msra.mxu0 0
        %1621 = vmatprep.subr.bf16.mxu0 0
        %1622 = vmatpush1.bf16.msra.mxu0 0
        %1623 = vmatprep.subr.bf16.mxu0 0
        %1624 = vmatpush1.bf16.msra.mxu0 0
        %1625 = vmatprep.subr.bf16.mxu0 0
        %1626 = vmatpush1.bf16.msra.mxu0 0
        %1627 = vmatprep.subr.bf16.mxu0 0
        %1628 = vmatpush1.bf16.msra.mxu0 0
        %1629 = vmatprep.subr.bf16.mxu0 0
        %1630 = vmatpush1.bf16.msra.mxu0 0
        %1631 = vmatprep.subr.bf16.mxu0 0
        %1632 = vmatpush1.bf16.msra.mxu0 0
        %1633 = vmatprep.subr.bf16.mxu0 0
        %1634 = vmatpush1.bf16.msra.mxu0 0
        %1635 = vmatprep.subr.bf16.mxu0 0
        %1636 = vmatpush1.bf16.msra.mxu0 0
        %1637 = vmatprep.subr.bf16.mxu0 0
        %1638 = vmatpush1.bf16.msra.mxu0 0
        %1639 = vmatprep.mubr.bf16.mxu0 0
        %1640 = vmatmul.mubr.bf16.gmra.mrb[0].mxu0 %v1605
        %v1641 = vpop.f32.mrb[0].mxu0
        %v1642 = vadd.f32 0.0, %v1641
        %v1643 = vpop.f32.mrb[0].mxu0
        %v1644 = vpop.f32.mrb[0].mxu0
        %v1645 = vpop.f32.mrb[0].mxu0
        %1646 = vdwg.mxu0
        %v1647 = vpack.c.bf16 %v1642, %v1642
        %v1648 = vld [vmem:[%s989 + $0x4] sm:$0xf]
        %v1650 = vsel %vm1292, %v1647, 0
        %vm1652 = vcmask 1043456
        %v1654 = vsel %vm1652, %v1648, 0
        %1656 = vmatprep.subr.bf16.mxu0 0
        %1657 = vmatpush1.bf16.msra.mxu0 %v1654
        %1658 = vmatprep.subr.bf16.mxu0 0
        %1659 = vmatpush1.bf16.msra.mxu0 0
        %1660 = vmatprep.subr.bf16.mxu0 0
        %1661 = vmatpush1.bf16.msra.mxu0 0
        %1662 = vmatprep.subr.bf16.mxu0 0
        %1663 = vmatpush1.bf16.msra.mxu0 0
        %1664 = vmatprep.subr.bf16.mxu0 0
        %1665 = vmatpush1.bf16.msra.mxu0 0
        %1666 = vmatprep.subr.bf16.mxu0 0
        %1667 = vmatpush1.bf16.msra.mxu0 0
        %1668 = vmatprep.subr.bf16.mxu0 0
        %1669 = vmatpush1.bf16.msra.mxu0 0
        %1670 = vmatprep.subr.bf16.mxu0 0
        %1671 = vmatpush1.bf16.msra.mxu0 0
        %1672 = vmatprep.subr.bf16.mxu0 0
        %1673 = vmatpush1.bf16.msra.mxu0 0
        %1674 = vmatprep.subr.bf16.mxu0 0
        %1675 = vmatpush1.bf16.msra.mxu0 0
        %1676 = vmatprep.subr.bf16.mxu0 0
        %1677 = vmatpush1.bf16.msra.mxu0 0
        %1678 = vmatprep.subr.bf16.mxu0 0
        %1679 = vmatpush1.bf16.msra.mxu0 0
        %1680 = vmatprep.subr.bf16.mxu0 0
        %1681 = vmatpush1.bf16.msra.mxu0 0
        %1682 = vmatprep.subr.bf16.mxu0 0
        %1683 = vmatpush1.bf16.msra.mxu0 0
        %1684 = vmatprep.subr.bf16.mxu0 0
        %1685 = vmatpush1.bf16.msra.mxu0 0
        %1686 = vmatprep.subr.bf16.mxu0 0
        %1687 = vmatpush1.bf16.msra.mxu0 0
        %1688 = vmatprep.mubr.bf16.mxu0 0
        %1689 = vmatmul.mubr.bf16.gmra.mrb[0].mxu0 %v1650
        %v1690 = vpop.f32.mrb[0].mxu0
        %v1691 = vadd.f32 0.0, %v1690
        %v1692 = vpop.f32.mrb[0].mxu0
        %v1693 = vpop.f32.mrb[0].mxu0
        %v1694 = vpop.f32.mrb[0].mxu0
        %1695 = vdwg.mxu0
        %v1697 = vsel %vm1292, %v1598, 0
        %v1700 = vsel %vm1652, %v1599, 0
        %1702 = vmatprep.subr.bf16.mxu0 0
        %1703 = vmatpush1.bf16.msra.mxu0 %v1700
        %1704 = vmatprep.subr.bf16.mxu0 0
        %1705 = vmatpush1.bf16.msra.mxu0 0
        %1706 = vmatprep.subr.bf16.mxu0 0
        %1707 = vmatpush1.bf16.msra.mxu0 0
        %1708 = vmatprep.subr.bf16.mxu0 0
        %1709 = vmatpush1.bf16.msra.mxu0 0
        %1710 = vmatprep.subr.bf16.mxu0 0
        %1711 = vmatpush1.bf16.msra.mxu0 0
        %1712 = vmatprep.subr.bf16.mxu0 0
        %1713 = vmatpush1.bf16.msra.mxu0 0
        %1714 = vmatprep.subr.bf16.mxu0 0
        %1715 = vmatpush1.bf16.msra.mxu0 0
        %1716 = vmatprep.subr.bf16.mxu0 0
        %1717 = vmatpush1.bf16.msra.mxu0 0
        %1718 = vmatprep.subr.bf16.mxu0 0
        %1719 = vmatpush1.bf16.msra.mxu0 0
        %1720 = vmatprep.subr.bf16.mxu0 0
        %1721 = vmatpush1.bf16.msra.mxu0 0
        %1722 = vmatprep.subr.bf16.mxu0 0
        %1723 = vmatpush1.bf16.msra.mxu0 0
        %1724 = vmatprep.subr.bf16.mxu0 0
        %1725 = vmatpush1.bf16.msra.mxu0 0
        %1726 = vmatprep.subr.bf16.mxu0 0
        %1727 = vmatpush1.bf16.msra.mxu0 0
        %1728 = vmatprep.subr.bf16.mxu0 0
        %1729 = vmatpush1.bf16.msra.mxu0 0
        %1730 = vmatprep.subr.bf16.mxu0 0
        %1731 = vmatpush1.bf16.msra.mxu0 0
        %1732 = vmatprep.subr.bf16.mxu0 0
        %1733 = vmatpush1.bf16.msra.mxu0 0
        %1734 = vmatprep.mubr.bf16.mxu0 0
        %1735 = vmatmul.mubr.bf16.gmra.mrb[0].mxu0 %v1697
        %v1736 = vpop.f32.mrb[0].mxu0
        %v1737 = vadd.f32 %v1691, %v1736
        %v1738 = vpop.f32.mrb[0].mxu0
        %v1739 = vpop.f32.mrb[0].mxu0
        %v1740 = vpop.f32.mrb[0].mxu0
        %1741 = vdwg.mxu0
        %1742 = vrot.lane.b32.xlu0 %v1239, 112
        %v1743 = vpop.permute.xlu0 %1742
        %v1746 = vsel %vm1490, %v1553, 0
        %1748 = vmatprep.subr.bf16.mxu0 0
        %1749 = vmatpush1.bf16.msra.mxu0 %v1743
        %1750 = vmatprep.subr.bf16.mxu0 0
        %1751 = vmatpush1.bf16.msra.mxu0 0
        %1752 = vmatprep.subr.bf16.mxu0 0
        %1753 = vmatpush1.bf16.msra.mxu0 0
        %1754 = vmatprep.subr.bf16.mxu0 0
        %1755 = vmatpush1.bf16.msra.mxu0 0
        %1756 = vmatprep.subr.bf16.mxu0 0
        %1757 = vmatpush1.bf16.msra.mxu0 0
        %1758 = vmatprep.subr.bf16.mxu0 0
        %1759 = vmatpush1.bf16.msra.mxu0 0
        %1760 = vmatprep.subr.bf16.mxu0 0
        %1761 = vmatpush1.bf16.msra.mxu0 0
        %1762 = vmatprep.subr.bf16.mxu0 0
        %1763 = vmatpush1.bf16.msra.mxu0 0
        %1764 = vmatprep.subr.bf16.mxu0 0
        %1765 = vmatpush1.bf16.msra.mxu0 0
        %1766 = vmatprep.subr.bf16.mxu0 0
        %1767 = vmatpush1.bf16.msra.mxu0 0
        %1768 = vmatprep.subr.bf16.mxu0 0
        %1769 = vmatpush1.bf16.msra.mxu0 0
        %1770 = vmatprep.subr.bf16.mxu0 0
        %1771 = vmatpush1.bf16.msra.mxu0 0
        %1772 = vmatprep.subr.bf16.mxu0 0
        %1773 = vmatpush1.bf16.msra.mxu0 0
        %1774 = vmatprep.subr.bf16.mxu0 0
        %1775 = vmatpush1.bf16.msra.mxu0 0
        %1776 = vmatprep.subr.bf16.mxu0 0
        %1777 = vmatpush1.bf16.msra.mxu0 0
        %1778 = vmatprep.subr.bf16.mxu0 0
        %1779 = vmatpush1.bf16.msra.mxu0 0
        %1780 = vmatprep.mubr.bf16.mxu0 0
        %1781 = vmatmul.mubr.bf16.gmra.mrb[0].mxu0 %v1746
        %v1782 = vpop.f32.mrb[0].mxu0
        %v1783 = vadd.f32 0.0, %v1782
        %v1784 = vpop.f32.mrb[0].mxu0
        %v1785 = vpop.f32.mrb[0].mxu0
        %v1786 = vpop.f32.mrb[0].mxu0
        %1787 = vdwg.mxu0
        %v1788 = vpack.c.bf16 %v1783, %v1783
        %v1789 = vld [vmem:[%s989 + $0x8] sm:$0xf]
        %v1791 = vsel %vm1292, %v1788, 0
        %v1794 = vsel %vm1652, %v1789, 0
        %1796 = vmatprep.subr.bf16.mxu0 0
        %1797 = vmatpush1.bf16.msra.mxu0 %v1794
        %1798 = vmatprep.subr.bf16.mxu0 0
        %1799 = vmatpush1.bf16.msra.mxu0 0
        %1800 = vmatprep.subr.bf16.mxu0 0
        %1801 = vmatpush1.bf16.msra.mxu0 0
        %1802 = vmatprep.subr.bf16.mxu0 0
        %1803 = vmatpush1.bf16.msra.mxu0 0
        %1804 = vmatprep.subr.bf16.mxu0 0
        %1805 = vmatpush1.bf16.msra.mxu0 0
        %1806 = vmatprep.subr.bf16.mxu0 0
        %1807 = vmatpush1.bf16.msra.mxu0 0
        %1808 = vmatprep.subr.bf16.mxu0 0
        %1809 = vmatpush1.bf16.msra.mxu0 0
        %1810 = vmatprep.subr.bf16.mxu0 0
        %1811 = vmatpush1.bf16.msra.mxu0 0
        %1812 = vmatprep.subr.bf16.mxu0 0
        %1813 = vmatpush1.bf16.msra.mxu0 0
        %1814 = vmatprep.subr.bf16.mxu0 0
        %1815 = vmatpush1.bf16.msra.mxu0 0
        %1816 = vmatprep.subr.bf16.mxu0 0
        %1817 = vmatpush1.bf16.msra.mxu0 0
        %1818 = vmatprep.subr.bf16.mxu0 0
        %1819 = vmatpush1.bf16.msra.mxu0 0
        %1820 = vmatprep.subr.bf16.mxu0 0
        %1821 = vmatpush1.bf16.msra.mxu0 0
        %1822 = vmatprep.subr.bf16.mxu0 0
        %1823 = vmatpush1.bf16.msra.mxu0 0
        %1824 = vmatprep.subr.bf16.mxu0 0
        %1825 = vmatpush1.bf16.msra.mxu0 0
        %1826 = vmatprep.subr.bf16.mxu0 0
        %1827 = vmatpush1.bf16.msra.mxu0 0
        %1828 = vmatprep.mubr.bf16.mxu0 0
        %1829 = vmatmul.mubr.bf16.gmra.mrb[0].mxu0 %v1791
        %v1830 = vpop.f32.mrb[0].mxu0
        %v1831 = vadd.f32 0.0, %v1830
        %v1832 = vpop.f32.mrb[0].mxu0
        %v1833 = vpop.f32.mrb[0].mxu0
        %v1834 = vpop.f32.mrb[0].mxu0
        %1835 = vdwg.mxu0
        %v1836 = vadd.f32 %v1737, %v1831
        %1837 = vrot.lane.b32.xlu0 %v1239, 104
        %v1838 = vpop.permute.xlu0 %1837
        %v1841 = vsel %vm1490, %v1554, 0
        %1843 = vmatprep.subr.bf16.mxu0 0
        %1844 = vmatpush1.bf16.msra.mxu0 %v1838
        %1845 = vmatprep.subr.bf16.mxu0 0
        %1846 = vmatpush1.bf16.msra.mxu0 0
        %1847 = vmatprep.subr.bf16.mxu0 0
        %1848 = vmatpush1.bf16.msra.mxu0 0
        %1849 = vmatprep.subr.bf16.mxu0 0
        %1850 = vmatpush1.bf16.msra.mxu0 0
        %1851 = vmatprep.subr.bf16.mxu0 0
        %1852 = vmatpush1.bf16.msra.mxu0 0
        %1853 = vmatprep.subr.bf16.mxu0 0
        %1854 = vmatpush1.bf16.msra.mxu0 0
        %1855 = vmatprep.subr.bf16.mxu0 0
        %1856 = vmatpush1.bf16.msra.mxu0 0
        %1857 = vmatprep.subr.bf16.mxu0 0
        %1858 = vmatpush1.bf16.msra.mxu0 0
        %1859 = vmatprep.subr.bf16.mxu0 0
        %1860 = vmatpush1.bf16.msra.mxu0 0
        %1861 = vmatprep.subr.bf16.mxu0 0
        %1862 = vmatpush1.bf16.msra.mxu0 0
        %1863 = vmatprep.subr.bf16.mxu0 0
        %1864 = vmatpush1.bf16.msra.mxu0 0
        %1865 = vmatprep.subr.bf16.mxu0 0
        %1866 = vmatpush1.bf16.msra.mxu0 0
        %1867 = vmatprep.subr.bf16.mxu0 0
        %1868 = vmatpush1.bf16.msra.mxu0 0
        %1869 = vmatprep.subr.bf16.mxu0 0
        %1870 = vmatpush1.bf16.msra.mxu0 0
        %1871 = vmatprep.subr.bf16.mxu0 0
        %1872 = vmatpush1.bf16.msra.mxu0 0
        %1873 = vmatprep.subr.bf16.mxu0 0
        %1874 = vmatpush1.bf16.msra.mxu0 0
        %1875 = vmatprep.mubr.bf16.mxu0 0
        %1876 = vmatmul.mubr.bf16.gmra.mrb[0].mxu0 %v1841
        %v1877 = vpop.f32.mrb[0].mxu0
        %v1878 = vadd.f32 0.0, %v1877
        %v1879 = vpop.f32.mrb[0].mxu0
        %v1880 = vpop.f32.mrb[0].mxu0
        %v1881 = vpop.f32.mrb[0].mxu0
        %1882 = vdwg.mxu0
        %v1883 = vpack.c.bf16 %v1878, %v1878
        %v1884 = vld [vmem:[%s989 + $0xc] sm:$0xf]
        %v1886 = vsel %vm1292, %v1883, 0
        %v1889 = vsel %vm1652, %v1884, 0
        %1891 = vmatprep.subr.bf16.mxu0 0
        %1892 = vmatpush1.bf16.msra.mxu0 %v1889
        %1893 = vmatprep.subr.bf16.mxu0 0
        %1894 = vmatpush1.bf16.msra.mxu0 0
        %1895 = vmatprep.subr.bf16.mxu0 0
        %1896 = vmatpush1.bf16.msra.mxu0 0
        %1897 = vmatprep.subr.bf16.mxu0 0
        %1898 = vmatpush1.bf16.msra.mxu0 0
        %1899 = vmatprep.subr.bf16.mxu0 0
        %1900 = vmatpush1.bf16.msra.mxu0 0
        %1901 = vmatprep.subr.bf16.mxu0 0
        %1902 = vmatpush1.bf16.msra.mxu0 0
        %1903 = vmatprep.subr.bf16.mxu0 0
        %1904 = vmatpush1.bf16.msra.mxu0 0
        %1905 = vmatprep.subr.bf16.mxu0 0
        %1906 = vmatpush1.bf16.msra.mxu0 0
        %1907 = vmatprep.subr.bf16.mxu0 0
        %1908 = vmatpush1.bf16.msra.mxu0 0
        %1909 = vmatprep.subr.bf16.mxu0 0
        %1910 = vmatpush1.bf16.msra.mxu0 0
        %1911 = vmatprep.subr.bf16.mxu0 0
        %1912 = vmatpush1.bf16.msra.mxu0 0
        %1913 = vmatprep.subr.bf16.mxu0 0
        %1914 = vmatpush1.bf16.msra.mxu0 0
        %1915 = vmatprep.subr.bf16.mxu0 0
        %1916 = vmatpush1.bf16.msra.mxu0 0
        %1917 = vmatprep.subr.bf16.mxu0 0
        %1918 = vmatpush1.bf16.msra.mxu0 0
        %1919 = vmatprep.subr.bf16.mxu0 0
        %1920 = vmatpush1.bf16.msra.mxu0 0
        %1921 = vmatprep.subr.bf16.mxu0 0
        %1922 = vmatpush1.bf16.msra.mxu0 0
        %1923 = vmatprep.mubr.bf16.mxu0 0
        %1924 = vmatmul.mubr.bf16.gmra.mrb[0].mxu0 %v1886
        %v1925 = vpop.f32.mrb[0].mxu0
        %v1926 = vadd.f32 0.0, %v1925
        %v1927 = vpop.f32.mrb[0].mxu0
        %v1928 = vpop.f32.mrb[0].mxu0
        %v1929 = vpop.f32.mrb[0].mxu0
        %1930 = vdwg.mxu0
        %v1931 = vadd.f32 %v1836, %v1926
        %v1932 = vld [vmem:[%s992] sm:$0x1]
        %v1934 = vlaneseq
        %v1935 = vshrl.u32 %v1934, 7
        %v1936 = vsub.s32 0, %v1935
        %v1937 = vrot.slane %v1932, %v1936
        %v1939 = vadd.f32 %v1931, %v1937
        %v1940 = vadd.f32 %v1029, %v1939
        %v1941 = vld [vmem:[%s995] sm:$0x1]
        %v1942 = vld [vmem:[%s998] sm:$0x1]
        %v1943 = vsel %vm1057, %v1940, 0.0
        %1944 = vadd.xlane.f32.xlu0 %v1943
        %v1945 = vpop.xlane.xlu0 %1944
        %v1946 = vrcp.pop 32.0
        %v1947 = vmul.f32 %v1945, %v1946
        %v1948 = vsub.f32 %v1940, %v1947
        %v1949 = vmul.f32 %v1948, %v1948
        %v1950 = vsel %vm1057, %v1949, 0.0
        %1951 = vadd.xlane.f32.xlu0 %v1950
        %v1952 = vpop.xlane.xlu0 %1951
        %v1953 = vmul.f32 %v1952, %v1946
        %v1954 = vadd.f32 %v1953, 1e-05
        %v1955 = vrsqrt.pop %v1954
        %v1956 = vmul.f32 %v1948, %v1955
        %v1958 = vlaneseq
        %v1959 = vshrl.u32 %v1958, 7
        %v1960 = vsub.s32 0, %v1959
        %v1961 = vrot.slane %v1941, %v1960
        %v1963 = vmul.f32 %v1956, %v1961
        %v1965 = vlaneseq
        %v1966 = vshrl.u32 %v1965, 7
        %v1967 = vsub.s32 0, %v1966
        %v1968 = vrot.slane %v1942, %v1967
        %v1970 = vadd.f32 %v1963, %v1968
        %v1971 = vpack.c.bf16 %v1970, %v1970
        %v1972 = vld [vmem:[%s1003] sm:$0xf]
        %v1973 = vld [vmem:[%s1003 + $0x4] sm:$0xf]
        %v1974 = vld [vmem:[%s1003 + $0x8] sm:$0xf]
        %v1975 = vld [vmem:[%s1003 + $0xc] sm:$0xf]
        %v1976 = vld [vmem:[%s1006] sm:$0x1]
        %v1978 = vlaneseq
        %v1979 = vshrl.u32 %v1978, 7
        %v1980 = vsub.s32 0, %v1979
        %v1981 = vrot.slane %v1976, %v1980
        %v1987 = vunpack.c.l.b16 %v1972
        %v1988 = vunpack.c.l.b16 %v1973
        %v1989 = vunpack.c.l.b16 %v1974
        %v1990 = vunpack.c.l.b16 %v1975
        %v1991 = vpack.c.b16 %v1988, %v1987
        %v1992 = vpack.c.b16 %v1990, %v1989
        %v1996 = vsel %vm1057, %v1971, 0
        %1998 = vmatprep.subr.bf16.mxu0 0
        %1999 = vmatpush1.bf16.msra.mxu0 %v1991
        %2000 = vmatprep.subr.bf16.mxu0 0
        %2001 = vmatpush1.bf16.msra.mxu0 %v1992
        %2002 = vmatprep.subr.bf16.mxu0 0
        %2003 = vmatpush1.bf16.msra.mxu0 0
        %2004 = vmatprep.subr.bf16.mxu0 0
        %2005 = vmatpush1.bf16.msra.mxu0 0
        %2006 = vmatprep.subr.bf16.mxu0 0
        %2007 = vmatpush1.bf16.msra.mxu0 0
        %2008 = vmatprep.subr.bf16.mxu0 0
        %2009 = vmatpush1.bf16.msra.mxu0 0
        %2010 = vmatprep.subr.bf16.mxu0 0
        %2011 = vmatpush1.bf16.msra.mxu0 0
        %2012 = vmatprep.subr.bf16.mxu0 0
        %2013 = vmatpush1.bf16.msra.mxu0 0
        %2014 = vmatprep.subr.bf16.mxu0 0
        %2015 = vmatpush1.bf16.msra.mxu0 0
        %2016 = vmatprep.subr.bf16.mxu0 0
        %2017 = vmatpush1.bf16.msra.mxu0 0
        %2018 = vmatprep.subr.bf16.mxu0 0
        %2019 = vmatpush1.bf16.msra.mxu0 0
        %2020 = vmatprep.subr.bf16.mxu0 0
        %2021 = vmatpush1.bf16.msra.mxu0 0
        %2022 = vmatprep.subr.bf16.mxu0 0
        %2023 = vmatpush1.bf16.msra.mxu0 0
        %2024 = vmatprep.subr.bf16.mxu0 0
        %2025 = vmatpush1.bf16.msra.mxu0 0
        %2026 = vmatprep.subr.bf16.mxu0 0
        %2027 = vmatpush1.bf16.msra.mxu0 0
        %2028 = vmatprep.subr.bf16.mxu0 0
        %2029 = vmatpush1.bf16.msra.mxu0 0
        %2030 = vmatprep.mubr.bf16.mxu0 0
        %2031 = vmatmul.mubr.bf16.gmra.mrb[0].mxu0 %v1996
        %v2032 = vpop.f32.mrb[0].mxu0
        %v2033 = vadd.f32 %v1981, %v2032
        %v2034 = vpop.f32.mrb[0].mxu0
        %v2035 = vpop.f32.mrb[0].mxu0
        %v2036 = vpop.f32.mrb[0].mxu0
        %2037 = vdwg.mxu0
        %v2038 = vmax.f32 %v2033, 0.0
        %v2039 = vpack.c.bf16 %v2038, %v2038
        %v2040 = vld [vmem:[%s1011] sm:$0xf]
        %v2041 = vld [vmem:[%s1011 + $0x4] sm:$0xf]
        %v2042 = vld [vmem:[%s1011 + $0x8] sm:$0xf]
        %v2043 = vld [vmem:[%s1011 + $0xc] sm:$0xf]
        %v2044 = vld [vmem:[%s1011 + $0x10] sm:$0xf]
        %v2045 = vld [vmem:[%s1011 + $0x14] sm:$0xf]
        %v2046 = vld [vmem:[%s1011 + $0x18] sm:$0xf]
        %v2047 = vld [vmem:[%s1011 + $0x1c] sm:$0xf]
        %v2048 = vld [vmem:[%s1011 + $0x20] sm:$0xf]
        %v2049 = vld [vmem:[%s1011 + $0x24] sm:$0xf]
        %v2050 = vld [vmem:[%s1011 + $0x28] sm:$0xf]
        %v2051 = vld [vmem:[%s1011 + $0x2c] sm:$0xf]
        %v2052 = vld [vmem:[%s1011 + $0x30] sm:$0xf]
        %v2053 = vld [vmem:[%s1011 + $0x34] sm:$0xf]
        %v2054 = vld [vmem:[%s1011 + $0x38] sm:$0xf]
        %v2055 = vld [vmem:[%s1011 + $0x3c] sm:$0xf]
        %v2056 = vld [vmem:[%s1014] sm:$0x1]
        %v2058 = vlaneseq
        %v2059 = vshrl.u32 %v2058, 7
        %v2060 = vsub.s32 0, %v2059
        %v2061 = vrot.slane %v2056, %v2060
        %v2079 = vunpack.c.l.b16 %v2040
        %v2080 = vunpack.c.l.b16 %v2041
        %v2081 = vunpack.c.l.b16 %v2042
        %v2082 = vunpack.c.l.b16 %v2043
        %v2083 = vunpack.c.l.b16 %v2044
        %v2084 = vunpack.c.l.b16 %v2045
        %v2085 = vunpack.c.l.b16 %v2046
        %v2086 = vunpack.c.l.b16 %v2047
        %v2087 = vunpack.c.l.b16 %v2048
        %v2088 = vunpack.c.l.b16 %v2049
        %v2089 = vunpack.c.l.b16 %v2050
        %v2090 = vunpack.c.l.b16 %v2051
        %v2091 = vunpack.c.l.b16 %v2052
        %v2092 = vunpack.c.l.b16 %v2053
        %v2093 = vunpack.c.l.b16 %v2054
        %v2094 = vunpack.c.l.b16 %v2055
        %v2095 = vpack.c.b16 %v2080, %v2079
        %v2096 = vpack.c.b16 %v2082, %v2081
        %v2097 = vpack.c.b16 %v2084, %v2083
        %v2098 = vpack.c.b16 %v2086, %v2085
        %v2099 = vpack.c.b16 %v2088, %v2087
        %v2100 = vpack.c.b16 %v2090, %v2089
        %v2101 = vpack.c.b16 %v2092, %v2091
        %v2102 = vpack.c.b16 %v2094, %v2093
        %2111 = vmatprep.subr.bf16.mxu0 0
        %2112 = vmatpush1.bf16.msra.mxu0 %v2095
        %2113 = vmatprep.subr.bf16.mxu0 0
        %2114 = vmatpush1.bf16.msra.mxu0 %v2096
        %2115 = vmatprep.subr.bf16.mxu0 0
        %2116 = vmatpush1.bf16.msra.mxu0 %v2097
        %2117 = vmatprep.subr.bf16.mxu0 0
        %2118 = vmatpush1.bf16.msra.mxu0 %v2098
        %2119 = vmatprep.subr.bf16.mxu0 0
        %2120 = vmatpush1.bf16.msra.mxu0 %v2099
        %2121 = vmatprep.subr.bf16.mxu0 0
        %2122 = vmatpush1.bf16.msra.mxu0 %v2100
        %2123 = vmatprep.subr.bf16.mxu0 0
        %2124 = vmatpush1.bf16.msra.mxu0 %v2101
        %2125 = vmatprep.subr.bf16.mxu0 0
        %2126 = vmatpush1.bf16.msra.mxu0 %v2102
        %2127 = vmatprep.subr.bf16.mxu0 0
        %2128 = vmatpush1.bf16.msra.mxu0 0
        %2129 = vmatprep.subr.bf16.mxu0 0
        %2130 = vmatpush1.bf16.msra.mxu0 0
        %2131 = vmatprep.subr.bf16.mxu0 0
        %2132 = vmatpush1.bf16.msra.mxu0 0
        %2133 = vmatprep.subr.bf16.mxu0 0
        %2134 = vmatpush1.bf16.msra.mxu0 0
        %2135 = vmatprep.subr.bf16.mxu0 0
        %2136 = vmatpush1.bf16.msra.mxu0 0
        %2137 = vmatprep.subr.bf16.mxu0 0
        %2138 = vmatpush1.bf16.msra.mxu0 0
        %2139 = vmatprep.subr.bf16.mxu0 0
        %2140 = vmatpush1.bf16.msra.mxu0 0
        %2141 = vmatprep.subr.bf16.mxu0 0
        %2142 = vmatpush1.bf16.msra.mxu0 0
        %2143 = vmatprep.mubr.bf16.mxu0 0
        %2144 = vmatmul.mubr.bf16.gmra.mrb[0].mxu0 %v2039
        %v2145 = vpop.f32.mrb[0].mxu0
        %v2146 = vadd.f32 %v2061, %v2145
        %v2147 = vpop.f32.mrb[0].mxu0
        %v2148 = vpop.f32.mrb[0].mxu0
        %v2149 = vpop.f32.mrb[0].mxu0
        %2150 = vdwg.mxu0
        %v2151 = vadd.f32 %v1970, %v2146
        %v2152 = vld [vmem:[%s1017] sm:$0x1]
        %v2153 = vld [vmem:[%s1020] sm:$0x1]
        %v2154 = vsel %vm1057, %v2151, 0.0
        %2155 = vadd.xlane.f32.xlu0 %v2154
        %v2156 = vpop.xlane.xlu0 %2155
        %v2157 = vmul.f32 %v2156, %v1946
        %v2158 = vsub.f32 %v2151, %v2157
        %v2159 = vmul.f32 %v2158, %v2158
        %v2160 = vsel %vm1057, %v2159, 0.0
        %2161 = vadd.xlane.f32.xlu0 %v2160
        %v2162 = vpop.xlane.xlu0 %2161
        %v2163 = vmul.f32 %v2162, %v1946
        %v2164 = vadd.f32 %v2163, 1e-05
        %v2165 = vrsqrt.pop %v2164
        %v2166 = vmul.f32 %v2158, %v2165
        %v2168 = vlaneseq
        %v2169 = vshrl.u32 %v2168, 7
        %v2170 = vsub.s32 0, %v2169
        %v2171 = vrot.slane %v2152, %v2170
        %v2173 = vmul.f32 %v2166, %v2171
        %v2175 = vlaneseq
        %v2176 = vshrl.u32 %v2175, 7
        %v2177 = vsub.s32 0, %v2176
        %v2178 = vrot.slane %v2153, %v2177
        %v2180 = vadd.f32 %v2173, %v2178
        %2181 = vst.msk [vmem:[#allocation2] sm:$0xff] %vm1057, %v2180
        %2182 = vst.msk [vmem:[%s944] sm:$0xff] %vm1057, %v2180
        %2183 = vst.msk [vmem:[%s951] sm:$0xff] %vm1490, %v1498
        %vm2184 = vcmask 122880
        %2185 = vst.msk [vmem:[%s957] sm:$0x1] %vm2184, %v1291
        %s2186 = sand.u32 %s561, 1
        %s2187 = scalar_lea.sflag [#allocation5], %s2186
        %s2188 = sand.u32 %s561, 1
        %s2189 = smul.addr %s2188, 8
        %s2190 = scalar_lea.vmem [#allocation8], %s2189
        %s2191 = sand.u32 %s45, 1
        %s2192 = scalar_lea.sflag [#allocation10], %s2191
        %s2193 = sand.u32 %s589, 1
        %s2194 = smul.addr %s2193, 8
        %s2195 = scalar_lea.vmem [#allocation9], %s2194
        %s2196 = sand.u32 %s45, 1
        %s2197 = scalar_lea.sflag [#allocation10], %s2196
        %s2198 = sand.u32 %s617, 1
        %s2199 = scalar_lea.vmem [#allocation11], %s2198
        // Predicated region
        $region109: #{_fused_decoder_call.1} parent=95 // pred_check
          %p2200 = pneg %p571
        $region110: #{_fused_decoder_call.1} parent=95 // pred_check_branch
          %2202 = sbr.rel (%p2200) target = $region112
        $region111: #{_fused_decoder_call.1} parent=95 // pred_region
          %s2204 = ssub.s32 128, 128
          %2205 = vsyncadd %s2187, %s2204
          %s2206 = smul.addr %s50, 2
          %s2207 = sadd.s32 %s49, %s2206
          %s2208 = smul.addr %s2207, 128
          %s2209 = scalar_lea.hbm %s19, %s2208
          %s2211 = sshll.u32 %s2190, 4
          %s2212 = int_to_ptr.vmem [resolvable:$true] %s2211
          %2214 = dma.vmem_to_hbm [thread:$0]  %s2212, 128, %s2209, %s2187
        $region112: #{_fused_decoder_call.1} parent=95 // pred_fallthru
          _
        // Predicated region
        $region113: #{_fused_decoder_call.1} parent=95 // pred_check
          %p2215 = pneg %p599
        $region114: #{_fused_decoder_call.1} parent=95 // pred_check_branch
          %2217 = sbr.rel (%p2215) target = $region116
        $region115: #{_fused_decoder_call.1} parent=95 // pred_region
          %s2219 = ssub.s32 128, 128
          %2220 = vsyncadd %s2192, %s2219
          %s2221 = smul.addr %s50, 2
          %s2222 = sadd.s32 %s49, %s2221
          %s2223 = smul.addr %s2222, 128
          %s2224 = scalar_lea.hbm %s20, %s2223
          %s2226 = sshll.u32 %s2195, 4
          %s2227 = int_to_ptr.vmem [resolvable:$true] %s2226
          %2229 = dma.vmem_to_hbm [thread:$0]  %s2227, 128, %s2224, %s2192
        $region116: #{_fused_decoder_call.1} parent=95 // pred_fallthru
          _
        // Predicated region
        $region117: #{_fused_decoder_call.1} parent=95 // pred_check
          %p2230 = pneg %p627
        $region118: #{_fused_decoder_call.1} parent=95 // pred_check_branch
          %2232 = sbr.rel (%p2230) target = $region120
        $region119: #{_fused_decoder_call.1} parent=95 // pred_region
          %s2234 = ssub.s32 16, 16
          %2235 = vsyncadd %s2197, %s2234
          %s2236 = smul.addr %s50, 2
          %s2237 = sadd.s32 %s49, %s2236
          %s2238 = smul.addr %s2237, 16
          %s2239 = scalar_lea.hbm %s21, %s2238
          %s2241 = sshll.u32 %s2199, 4
          %s2242 = int_to_ptr.vmem [resolvable:$true] %s2241
          %2244 = dma.vmem_to_hbm [thread:$0]  %s2242, 16, %s2239, %s2197
        $region120: #{_fused_decoder_call.1} parent=95 // pred_fallthru
          _
      $region96: #{_fused_decoder_call.1} parent=5 // pred_fallthru
        _
      %p2245 = scmp.le.s32.totalorder 2, %s40
      // Predicated region
      $region121: #{_fused_decoder_call.1} parent=5 // pred_check
        %p2246 = pneg %p2245
      $region122: #{_fused_decoder_call.1} parent=5 // pred_check_branch
        %2248 = sbr.rel (%p2246) target = $region124
      $region123: #{_fused_decoder_call.1} parent=5 // pred_region
        %s2249 = ssub.s32 %s40, 2
        // Predicated region
        $region125: #{_fused_decoder_call.1} parent=123 // pred_check
          %p2250 = pneg %p577
        $region126: #{_fused_decoder_call.1} parent=123 // pred_check_branch
          %2252 = sbr.rel (%p2250) target = $region128
        $region127: #{_fused_decoder_call.1} parent=123 // pred_region
          %s2253 = sand.u32 %s562, 1
          %s2254 = scalar_lea.sflag [#allocation5], %s2253
          %s2255 = sand.u32 %s562, 1
          %s2256 = smul.addr %s2255, 8
          %s2257 = scalar_lea.vmem [#allocation8], %s2256
          %2258 = dma.done %s2254, 128
        $region128: #{_fused_decoder_call.1} parent=123 // pred_fallthru
          _
        // Predicated region
        $region129: #{_fused_decoder_call.1} parent=123 // pred_check
          %p2259 = pneg %p605
        $region130: #{_fused_decoder_call.1} parent=123 // pred_check_branch
          %2261 = sbr.rel (%p2259) target = $region132
        $region131: #{_fused_decoder_call.1} parent=123 // pred_region
          %s2262 = sand.u32 %s46, 1
          %s2263 = scalar_lea.sflag [#allocation10], %s2262
          %s2264 = sand.u32 %s590, 1
          %s2265 = smul.addr %s2264, 8
          %s2266 = scalar_lea.vmem [#allocation9], %s2265
          %2267 = dma.done %s2263, 128
        $region132: #{_fused_decoder_call.1} parent=123 // pred_fallthru
          _
        // Predicated region
        $region133: #{_fused_decoder_call.1} parent=123 // pred_check
          %p2268 = pneg %p633
        $region134: #{_fused_decoder_call.1} parent=123 // pred_check_branch
          %2270 = sbr.rel (%p2268) target = $region136
        $region135: #{_fused_decoder_call.1} parent=123 // pred_region
          %s2271 = sand.u32 %s46, 1
          %s2272 = scalar_lea.sflag [#allocation10], %s2271
          %s2273 = sand.u32 %s618, 1
          %s2274 = scalar_lea.vmem [#allocation11], %s2273
          %2275 = dma.done %s2272, 16
        $region136: #{_fused_decoder_call.1} parent=123 // pred_fallthru
          _
      $region124: #{_fused_decoder_call.1} parent=5 // pred_fallthru
        _
    $region6: #{_fused_decoder_call.1} parent=1 // loop_footer
      %s44 = sadd.s32 1, %s40
    $region7: #{_fused_decoder_call.1} parent=1 // loop_footer_branch
      %39 = sbr.rel target = $region3
    $region8: #{_fused_decoder_call.1} parent=1 // loop_exit
      _
    %2276 = vsyncpa [#allocation4], 1
    %s2277 = scalar_lea.sflag [#allocation4], 1
    %2278 = vsyncpa %s2277, 1
    %2279 = vsyncpa [#allocation7], 1
    %s2280 = scalar_lea.sflag [#allocation7], 1
    %2281 = vsyncpa %s2280, 1
    %2282 = vsyncpa [#allocation5], 1
    %s2283 = scalar_lea.sflag [#allocation5], 1
    %2284 = vsyncpa %s2283, 1
    %2285 = vsyncpa [#allocation10], 1
    %s2286 = scalar_lea.sflag [#allocation10], 1
    %2287 = vsyncpa %s2286, 1

</llo_original>
